<compile_context>
chip_gen: v5e
topology: v5e:2x2
jax: 0.10.0
libtpu: 0.0.40
codegen_flags: <defaults>
</compile_context>

<pallas_src>
import numpy as np
import jax
import jax.numpy as jnp
from jax.experimental import pallas as pl
from jax.experimental.pallas import tpu as pltpu

# ---- module hyper-parameters (fixed by the PyTorch module definition) -------
INP_CHANNEL = 4
MULT = 1
IN_FEATURES = 20
OUT_FEATURES = (160 + 200 * (MULT - 1)) * 4      # 640
L0 = OUT_FEATURES // 4                            # 160  (after view(1, 4, -1))
K1, C1_IN, C1_OUT = 11, 4, 16
K2, C2_IN, C2_OUT = 31, 16, INP_CHANNEL
L1 = L0 + K1 - 1                                  # 170
L2 = L1 + K2 - 1                                  # 200

# ---- kernel layout constants -------------------------------------------------
LP = 256                        # lane-padded compute width (multiple of 128, >= L2)
DATA_OFF = 128                  # activations sit at this lane offset in source bufs
LPW = DATA_OFF + LP             # 384: width of the padded source buffers
OFF1 = DATA_OFF - (K1 - 1)      # 118: first shifted-slice offset, layer 1
OFF2 = DATA_OFF - (K2 - 1)      # 98 : first shifted-slice offset, layer 2


# ------------------------------- fused kernel ---------------------------------
def fused_decoder_kernel(z_ref, wlin_ref, blin_ref, w1_ref, b1_ref,
                         w2_ref, b2_ref, o_ref,
                         p1_ref, u1_ref, p2_ref, u2_ref):
    # ---- stage 1: Linear + ReLU, emitted channels-first & lane-padded --------
    # wlin columns [c*LP, (c+1)*LP) hold channel c (zeros in the pad region), so
    # ReLU(0 + 0) = 0 already gives the conv zero-padding beyond l = 160.
    h = jnp.dot(z_ref[...], wlin_ref[...],
                preferred_element_type=jnp.float32)            # (1, 4*LP)
    h = jnp.maximum(h + blin_ref[...], 0.0)

    p1_ref[:, 0:DATA_OFF] = jnp.zeros((C1_IN, DATA_OFF), jnp.float32)
    for c in range(C1_IN):                                     # 4 aligned (1,256) stores
        p1_ref[c:c + 1, DATA_OFF:LPW] = h[:, c * LP:(c + 1) * LP]

    # ---- stage 2: ConvTranspose1d(4,16,11) as ONE im2col matmul + ReLU -------
    p1 = p1_ref[...]                                           # (4, 384)
    for k in range(K1):                                        # build (44, 256) unfold
        u1_ref[k * C1_IN:(k + 1) * C1_IN, :] = p1[:, OFF1 + k:OFF1 + k + LP]
    y1 = jnp.dot(w1_ref[...], u1_ref[...],
                 preferred_element_type=jnp.float32)           # (16, 256)
    y1 = jnp.maximum(y1 + b1_ref[...], 0.0)
    lane = jax.lax.broadcasted_iota(jnp.int32, (C1_OUT, LP), 1)
    y1 = jnp.where(lane < L1, y1, 0.0)                         # zero the lane padding

    p2_ref[:, 0:DATA_OFF] = jnp.zeros((C2_IN, DATA_OFF), jnp.float32)
    p2_ref[:, DATA_OFF:LPW] = y1                               # aligned (16, 256) store

    # ---- stage 3: ConvTranspose1d(16,C,31) as ONE im2col matmul --------------
    p2 = p2_ref[...]                                           # (16, 384)
    for k in range(K2):                                        # build (496, 256) unfold
        u2_ref[k * C2_IN:(k + 1) * C2_IN, :] = p2[:, OFF2 + k:OFF2 + k + LP]
    y2 = jnp.dot(w2_ref[...], u2_ref[...],
                 preferred_element_type=jnp.float32)           # (C, 256)
    y2 = y2 + b2_ref[...]

    # dropout(p=0) is the identity; slice away lane padding only here.
    o_ref[0] = y2[:, :L2]


# ---------------------- one-time parameter preprocessing ----------------------
def _prep_tconv_weight(w):
    # torch ConvTranspose1d weight (C_in, C_out, K) -> im2col matrix (C_out, K*C_in)
    # with W[co, k'*C_in + c] = w[c, co, K-1-k']  (flipped kernel, (k, c) row order)
    c_in, c_out, K = w.shape
    wf = jnp.flip(w, axis=2)
    return jnp.transpose(wf, (1, 2, 0)).reshape(c_out, K * c_in)


def prepare_params(raw):
    """Done once at init; the per-call path passes these straight to pallas_call."""
    # Linear weight arranged so the matmul directly emits a channels-first,
    # lane-padded activation: output column c*LP + l  <->  torch feature c*L0 + l.
    w_cf = raw["w_lin"].reshape(C1_IN, L0, IN_FEATURES)               # [c, l, i]
    w_cf = jnp.pad(w_cf, ((0, 0), (0, LP - L0), (0, 0)))              # [c, LP, i]
    wlin = jnp.transpose(w_cf, (2, 0, 1)).reshape(IN_FEATURES, C1_IN * LP)
    blin = jnp.pad(raw["b_lin"].reshape(C1_IN, L0),
                   ((0, 0), (0, LP - L0))).reshape(1, C1_IN * LP)
    return {
        "wlin": wlin.astype(jnp.float32),
        "blin": blin.astype(jnp.float32),
        "w1": _prep_tconv_weight(raw["w_t1"]).astype(jnp.float32),
        "b1": jnp.tile(raw["b_t1"][:, None], (1, LP)).astype(jnp.float32),
        "w2": _prep_tconv_weight(raw["w_t2"]).astype(jnp.float32),
        "b2": jnp.tile(raw["b_t2"][:, None], (1, LP)).astype(jnp.float32),
    }


# --------------------------------- wrapper ------------------------------------
def cnn_vardecoder_forward(z, prepped):
    vmem = pl.BlockSpec(memory_space=pltpu.MemorySpace.VMEM)
    return pl.pallas_call(
        fused_decoder_kernel,
        out_shape=jax.ShapeDtypeStruct((1, C2_OUT, L2), jnp.float32),
        in_specs=[vmem] * 7,
        out_specs=vmem,
        scratch_shapes=[
            pltpu.VMEM((C1_IN, LPW), jnp.float32),       # p1: padded linear output
            pltpu.VMEM((K1 * C1_IN, LP), jnp.float32),   # u1: im2col operand, layer 1
            pltpu.VMEM((C2_IN, LPW), jnp.float32),       # p2: padded tconv1 output
            pltpu.VMEM((K2 * C2_IN, LP), jnp.float32),   # u2: im2col operand, layer 2
        ],
    )(z, prepped["wlin"], prepped["blin"], prepped["w1"], prepped["b1"],
      prepped["w2"], prepped["b2"])


# ------------------------------ pure-JAX reference ----------------------------
def ref_tconv1d(x, w, b):
    # scatter definition of ConvTranspose1d, stride=1, pad=0
    N, c_in, L = x.shape
    _, c_out, K = w.shape
    y = jnp.zeros((N, c_out, L + K - 1), jnp.float32)
    for k in range(K):
        y = y.at[:, :, k:k + L].add(jnp.einsum("ncl,cd->ndl", x, w[:, :, k]))
    return y + b[None, :, None]


def ref_forward(z, params):
    h = jnp.maximum(z @ params["w_lin"].T + params["b_lin"], 0.0)
    h = h.reshape(1, 4, -1)
    h = jnp.maximum(ref_tconv1d(h, params["w_t1"], params["b_t1"]), 0.0)
    h = ref_tconv1d(h, params["w_t2"], params["b_t2"])
    return h


# ----------------------------------- main -------------------------------------
if __name__ == "__main__":
    key = jax.random.PRNGKey(0)
    ks = jax.random.split(key, 7)

    def u(k, shape, fan_in):
        bound = 1.0 / float(np.sqrt(fan_in))
        return jax.random.uniform(k, shape, jnp.float32, -bound, bound)

    raw = {
        "w_lin": u(ks[0], (OUT_FEATURES, IN_FEATURES), IN_FEATURES),
        "b_lin": u(ks[1], (OUT_FEATURES,), IN_FEATURES),
        "w_t1":  u(ks[2], (C1_IN, C1_OUT, K1), C1_IN * K1),
        "b_t1":  u(ks[3], (C1_OUT,), C1_IN * K1),
        "w_t2":  u(ks[4], (C2_IN, C2_OUT, K2), C2_IN * K2),
        "b_t2":  u(ks[5], (C2_OUT,), C2_IN * K2),
    }
    z = jax.random.normal(ks[6], (1, IN_FEATURES), jnp.float32)

    prepped = prepare_params(raw)                 # one-time weight preprocessing
    out = cnn_vardecoder_forward(z, prepped)
    out = jax.block_until_ready(out)

    ref = ref_forward(z, raw)
    assert out.shape == (1, INP_CHANNEL, L2), out.shape
    np.testing.assert_allclose(np.asarray(out), np.asarray(ref), rtol=1e-4, atol=1e-4)
    print("KERNEL_OK")
</pallas_src>

<mosaic_0001>
module attributes {stable_mosaic.version = 11 : i64} {
  func.func @fused_decoder_kernel(%arg0: memref<1x20xf32, #tpu.memory_space<vmem>>, %arg1: memref<20x1024xf32, #tpu.memory_space<vmem>>, %arg2: memref<1x1024xf32, #tpu.memory_space<vmem>>, %arg3: memref<16x44xf32, #tpu.memory_space<vmem>>, %arg4: memref<16x256xf32, #tpu.memory_space<vmem>>, %arg5: memref<4x496xf32, #tpu.memory_space<vmem>>, %arg6: memref<4x256xf32, #tpu.memory_space<vmem>>, %arg7: memref<1x4x200xf32, #tpu.memory_space<vmem>>, %arg8: memref<4x384xf32, #tpu.memory_space<vmem>>, %arg9: memref<44x256xf32, #tpu.memory_space<vmem>>, %arg10: memref<16x384xf32, #tpu.memory_space<vmem>>, %arg11: memref<496x256xf32, #tpu.memory_space<vmem>>) attributes {dimension_semantics = [], scalar_prefetch = 0 : i64, scratch_operands = 4 : i64, tpu.core_type = #tpu.core_type<tc>} {
    %c0 = arith.constant 0 : index
    %c0_0 = arith.constant 0 : index
    %0 = vector.load %arg0[%c0, %c0_0] : memref<1x20xf32, #tpu.memory_space<vmem>>, vector<1x20xf32>
    %c0_1 = arith.constant 0 : index
    %c0_2 = arith.constant 0 : index
    %1 = vector.load %arg1[%c0_1, %c0_2] : memref<20x1024xf32, #tpu.memory_space<vmem>>, vector<20x1024xf32>
    %cst = arith.constant dense<0.000000e+00> : vector<1x1024xf32>
    %2 = tpu.matmul %0, %1, %cst {dimension_numbers = #tpu.dot_dimension_numbers<[1], [0], [0], [1], [0, 0, 1, 1], [], []>} : vector<1x20xf32>, vector<20x1024xf32>, vector<1x1024xf32> -> vector<1x1024xf32>
    %c0_3 = arith.constant 0 : index
    %c0_4 = arith.constant 0 : index
    %3 = vector.load %arg2[%c0_3, %c0_4] : memref<1x1024xf32, #tpu.memory_space<vmem>>, vector<1x1024xf32>
    %4 = arith.addf %2, %3 : vector<1x1024xf32>
    %cst_5 = arith.constant 0.000000e+00 : f32
    %5 = vector.broadcast %cst_5 : f32 to vector<1x1024xf32>
    %6 = arith.maximumf %4, %5 : vector<1x1024xf32>
    %cst_6 = arith.constant 0.000000e+00 : f32
    %7 = vector.broadcast %cst_6 : f32 to vector<4x128xf32>
    %c0_7 = arith.constant 0 : index
    %c0_8 = arith.constant 0 : index
    %8 = vector.load %arg8[%c0_7, %c0_8] : memref<4x384xf32, #tpu.memory_space<vmem>>, vector<4x128xf32>
    tpu.vector_store %arg8[%c0_7, %c0_8], %7 {strides = array<i32>} : memref<4x384xf32, #tpu.memory_space<vmem>>, vector<4x128xf32>,
    %9 = vector.extract_strided_slice %6 {offsets = [0, 0], sizes = [1, 256], strides = [1, 1]} : vector<1x1024xf32> to vector<1x256xf32>
    %c0_9 = arith.constant 0 : index
    %c128 = arith.constant 128 : index
    %10 = vector.load %arg8[%c0_9, %c128] : memref<4x384xf32, #tpu.memory_space<vmem>>, vector<1x256xf32>
    tpu.vector_store %arg8[%c0_9, %c128], %9 {strides = array<i32>} : memref<4x384xf32, #tpu.memory_space<vmem>>, vector<1x256xf32>,
    %11 = vector.extract_strided_slice %6 {offsets = [0, 256], sizes = [1, 256], strides = [1, 1]} : vector<1x1024xf32> to vector<1x256xf32>
    %c1 = arith.constant 1 : index
    %c128_10 = arith.constant 128 : index
    %12 = vector.load %arg8[%c1, %c128_10] : memref<4x384xf32, #tpu.memory_space<vmem>>, vector<1x256xf32>
    tpu.vector_store %arg8[%c1, %c128_10], %11 {strides = array<i32>} : memref<4x384xf32, #tpu.memory_space<vmem>>, vector<1x256xf32>,
    %13 = vector.extract_strided_slice %6 {offsets = [0, 512], sizes = [1, 256], strides = [1, 1]} : vector<1x1024xf32> to vector<1x256xf32>
    %c2 = arith.constant 2 : index
    %c128_11 = arith.constant 128 : index
    %14 = vector.load %arg8[%c2, %c128_11] : memref<4x384xf32, #tpu.memory_space<vmem>>, vector<1x256xf32>
    tpu.vector_store %arg8[%c2, %c128_11], %13 {strides = array<i32>} : memref<4x384xf32, #tpu.memory_space<vmem>>, vector<1x256xf32>,
    %15 = vector.extract_strided_slice %6 {offsets = [0, 768], sizes = [1, 256], strides = [1, 1]} : vector<1x1024xf32> to vector<1x256xf32>
    %c3 = arith.constant 3 : index
    %c128_12 = arith.constant 128 : index
    %16 = vector.load %arg8[%c3, %c128_12] : memref<4x384xf32, #tpu.memory_space<vmem>>, vector<1x256xf32>
    tpu.vector_store %arg8[%c3, %c128_12], %15 {strides = array<i32>} : memref<4x384xf32, #tpu.memory_space<vmem>>, vector<1x256xf32>,
    %c0_13 = arith.constant 0 : index
    %c0_14 = arith.constant 0 : index
    %17 = vector.load %arg8[%c0_13, %c0_14] : memref<4x384xf32, #tpu.memory_space<vmem>>, vector<4x384xf32>
    %18 = vector.extract_strided_slice %17 {offsets = [0, 118], sizes = [4, 256], strides = [1, 1]} : vector<4x384xf32> to vector<4x256xf32>
    %c0_15 = arith.constant 0 : index
    %c0_16 = arith.constant 0 : index
    %19 = vector.load %arg9[%c0_15, %c0_16] : memref<44x256xf32, #tpu.memory_space<vmem>>, vector<4x256xf32>
    tpu.vector_store %arg9[%c0_15, %c0_16], %18 {strides = array<i32>} : memref<44x256xf32, #tpu.memory_space<vmem>>, vector<4x256xf32>,
    %20 = vector.extract_strided_slice %17 {offsets = [0, 119], sizes = [4, 256], strides = [1, 1]} : vector<4x384xf32> to vector<4x256xf32>
    %c4 = arith.constant 4 : index
    %c0_17 = arith.constant 0 : index
    %21 = vector.load %arg9[%c4, %c0_17] : memref<44x256xf32, #tpu.memory_space<vmem>>, vector<4x256xf32>
    tpu.vector_store %arg9[%c4, %c0_17], %20 {strides = array<i32>} : memref<44x256xf32, #tpu.memory_space<vmem>>, vector<4x256xf32>,
    %22 = vector.extract_strided_slice %17 {offsets = [0, 120], sizes = [4, 256], strides = [1, 1]} : vector<4x384xf32> to vector<4x256xf32>
    %c8 = arith.constant 8 : index
    %c0_18 = arith.constant 0 : index
    %23 = vector.load %arg9[%c8, %c0_18] : memref<44x256xf32, #tpu.memory_space<vmem>>, vector<4x256xf32>
    tpu.vector_store %arg9[%c8, %c0_18], %22 {strides = array<i32>} : memref<44x256xf32, #tpu.memory_space<vmem>>, vector<4x256xf32>,
    %24 = vector.extract_strided_slice %17 {offsets = [0, 121], sizes = [4, 256], strides = [1, 1]} : vector<4x384xf32> to vector<4x256xf32>
    %c12 = arith.constant 12 : index
    %c0_19 = arith.constant 0 : index
    %25 = vector.load %arg9[%c12, %c0_19] : memref<44x256xf32, #tpu.memory_space<vmem>>, vector<4x256xf32>
    tpu.vector_store %arg9[%c12, %c0_19], %24 {strides = array<i32>} : memref<44x256xf32, #tpu.memory_space<vmem>>, vector<4x256xf32>,
    %26 = vector.extract_strided_slice %17 {offsets = [0, 122], sizes = [4, 256], strides = [1, 1]} : vector<4x384xf32> to vector<4x256xf32>
    %c16 = arith.constant 16 : index
    %c0_20 = arith.constant 0 : index
    %27 = vector.load %arg9[%c16, %c0_20] : memref<44x256xf32, #tpu.memory_space<vmem>>, vector<4x256xf32>
    tpu.vector_store %arg9[%c16, %c0_20], %26 {strides = array<i32>} : memref<44x256xf32, #tpu.memory_space<vmem>>, vector<4x256xf32>,
    %28 = vector.extract_strided_slice %17 {offsets = [0, 123], sizes = [4, 256], strides = [1, 1]} : vector<4x384xf32> to vector<4x256xf32>
    %c20 = arith.constant 20 : index
    %c0_21 = arith.constant 0 : index
    %29 = vector.load %arg9[%c20, %c0_21] : memref<44x256xf32, #tpu.memory_space<vmem>>, vector<4x256xf32>
    tpu.vector_store %arg9[%c20, %c0_21], %28 {strides = array<i32>} : memref<44x256xf32, #tpu.memory_space<vmem>>, vector<4x256xf32>,
    %30 = vector.extract_strided_slice %17 {offsets = [0, 124], sizes = [4, 256], strides = [1, 1]} : vector<4x384xf32> to vector<4x256xf32>
    %c24 = arith.constant 24 : index
    %c0_22 = arith.constant 0 : index
    %31 = vector.load %arg9[%c24, %c0_22] : memref<44x256xf32, #tpu.memory_space<vmem>>, vector<4x256xf32>
    tpu.vector_store %arg9[%c24, %c0_22], %30 {strides = array<i32>} : memref<44x256xf32, #tpu.memory_space<vmem>>, vector<4x256xf32>,
    %32 = vector.extract_strided_slice %17 {offsets = [0, 125], sizes = [4, 256], strides = [1, 1]} : vector<4x384xf32> to vector<4x256xf32>
    %c28 = arith.constant 28 : index
    %c0_23 = arith.constant 0 : index
    %33 = vector.load %arg9[%c28, %c0_23] : memref<44x256xf32, #tpu.memory_space<vmem>>, vector<4x256xf32>
    tpu.vector_store %arg9[%c28, %c0_23], %32 {strides = array<i32>} : memref<44x256xf32, #tpu.memory_space<vmem>>, vector<4x256xf32>,
    %34 = vector.extract_strided_slice %17 {offsets = [0, 126], sizes = [4, 256], strides = [1, 1]} : vector<4x384xf32> to vector<4x256xf32>
    %c32 = arith.constant 32 : index
    %c0_24 = arith.constant 0 : index
    %35 = vector.load %arg9[%c32, %c0_24] : memref<44x256xf32, #tpu.memory_space<vmem>>, vector<4x256xf32>
    tpu.vector_store %arg9[%c32, %c0_24], %34 {strides = array<i32>} : memref<44x256xf32, #tpu.memory_space<vmem>>, vector<4x256xf32>,
    %36 = vector.extract_strided_slice %17 {offsets = [0, 127], sizes = [4, 256], strides = [1, 1]} : vector<4x384xf32> to vector<4x256xf32>
    %c36 = arith.constant 36 : index
    %c0_25 = arith.constant 0 : index
    %37 = vector.load %arg9[%c36, %c0_25] : memref<44x256xf32, #tpu.memory_space<vmem>>, vector<4x256xf32>
    tpu.vector_store %arg9[%c36, %c0_25], %36 {strides = array<i32>} : memref<44x256xf32, #tpu.memory_space<vmem>>, vector<4x256xf32>,
    %38 = vector.extract_strided_slice %17 {offsets = [0, 128], sizes = [4, 256], strides = [1, 1]} : vector<4x384xf32> to vector<4x256xf32>
    %c40 = arith.constant 40 : index
    %c0_26 = arith.constant 0 : index
    %39 = vector.load %arg9[%c40, %c0_26] : memref<44x256xf32, #tpu.memory_space<vmem>>, vector<4x256xf32>
    tpu.vector_store %arg9[%c40, %c0_26], %38 {strides = array<i32>} : memref<44x256xf32, #tpu.memory_space<vmem>>, vector<4x256xf32>,
    %c0_27 = arith.constant 0 : index
    %c0_28 = arith.constant 0 : index
    %40 = vector.load %arg3[%c0_27, %c0_28] : memref<16x44xf32, #tpu.memory_space<vmem>>, vector<16x44xf32>
    %c0_29 = arith.constant 0 : index
    %c0_30 = arith.constant 0 : index
    %41 = vector.load %arg9[%c0_29, %c0_30] : memref<44x256xf32, #tpu.memory_space<vmem>>, vector<44x256xf32>
    %cst_31 = arith.constant dense<0.000000e+00> : vector<16x256xf32>
    %42 = tpu.matmul %40, %41, %cst_31 {dimension_numbers = #tpu.dot_dimension_numbers<[1], [0], [0], [1], [0, 0, 1, 1], [], []>} : vector<16x44xf32>, vector<44x256xf32>, vector<16x256xf32> -> vector<16x256xf32>
    %c0_32 = arith.constant 0 : index
    %c0_33 = arith.constant 0 : index
    %43 = vector.load %arg4[%c0_32, %c0_33] : memref<16x256xf32, #tpu.memory_space<vmem>>, vector<16x256xf32>
    %44 = arith.addf %42, %43 : vector<16x256xf32>
    %cst_34 = arith.constant 0.000000e+00 : f32
    %45 = vector.broadcast %cst_34 : f32 to vector<16x256xf32>
    %46 = arith.maximumf %44, %45 : vector<16x256xf32>
    %47 = tpu.iota {dimensions = array<i32: 1>} : vector<16x256xi32>
    %c170_i32 = arith.constant 170 : i32
    %48 = vector.broadcast %c170_i32 : i32 to vector<16x256xi32>
    %49 = arith.cmpi slt, %47, %48 : vector<16x256xi32>
    %cst_35 = arith.constant 0.000000e+00 : f32
    %50 = vector.broadcast %cst_35 : f32 to vector<16x256xf32>
    %51 = arith.select %49, %46, %50 : vector<16x256xi1>, vector<16x256xf32>
    %cst_36 = arith.constant 0.000000e+00 : f32
    %52 = vector.broadcast %cst_36 : f32 to vector<16x128xf32>
    %c0_37 = arith.constant 0 : index
    %c0_38 = arith.constant 0 : index
    %53 = vector.load %arg10[%c0_37, %c0_38] : memref<16x384xf32, #tpu.memory_space<vmem>>, vector<16x128xf32>
    tpu.vector_store %arg10[%c0_37, %c0_38], %52 {strides = array<i32>} : memref<16x384xf32, #tpu.memory_space<vmem>>, vector<16x128xf32>,
    %c0_39 = arith.constant 0 : index
    %c128_40 = arith.constant 128 : index
    %54 = vector.load %arg10[%c0_39, %c128_40] : memref<16x384xf32, #tpu.memory_space<vmem>>, vector<16x256xf32>
    tpu.vector_store %arg10[%c0_39, %c128_40], %51 {strides = array<i32>} : memref<16x384xf32, #tpu.memory_space<vmem>>, vector<16x256xf32>,
    %c0_41 = arith.constant 0 : index
    %c0_42 = arith.constant 0 : index
    %55 = vector.load %arg10[%c0_41, %c0_42] : memref<16x384xf32, #tpu.memory_space<vmem>>, vector<16x384xf32>
    %56 = vector.extract_strided_slice %55 {offsets = [0, 98], sizes = [16, 256], strides = [1, 1]} : vector<16x384xf32> to vector<16x256xf32>
    %c0_43 = arith.constant 0 : index
    %c0_44 = arith.constant 0 : index
    %57 = vector.load %arg11[%c0_43, %c0_44] : memref<496x256xf32, #tpu.memory_space<vmem>>, vector<16x256xf32>
    tpu.vector_store %arg11[%c0_43, %c0_44], %56 {strides = array<i32>} : memref<496x256xf32, #tpu.memory_space<vmem>>, vector<16x256xf32>,
    %58 = vector.extract_strided_slice %55 {offsets = [0, 99], sizes = [16, 256], strides = [1, 1]} : vector<16x384xf32> to vector<16x256xf32>
    %c16_45 = arith.constant 16 : index
    %c0_46 = arith.constant 0 : index
    %59 = vector.load %arg11[%c16_45, %c0_46] : memref<496x256xf32, #tpu.memory_space<vmem>>, vector<16x256xf32>
    tpu.vector_store %arg11[%c16_45, %c0_46], %58 {strides = array<i32>} : memref<496x256xf32, #tpu.memory_space<vmem>>, vector<16x256xf32>,
    %60 = vector.extract_strided_slice %55 {offsets = [0, 100], sizes = [16, 256], strides = [1, 1]} : vector<16x384xf32> to vector<16x256xf32>
    %c32_47 = arith.constant 32 : index
    %c0_48 = arith.constant 0 : index
    %61 = vector.load %arg11[%c32_47, %c0_48] : memref<496x256xf32, #tpu.memory_space<vmem>>, vector<16x256xf32>
    tpu.vector_store %arg11[%c32_47, %c0_48], %60 {strides = array<i32>} : memref<496x256xf32, #tpu.memory_space<vmem>>, vector<16x256xf32>,
    %62 = vector.extract_strided_slice %55 {offsets = [0, 101], sizes = [16, 256], strides = [1, 1]} : vector<16x384xf32> to vector<16x256xf32>
    %c48 = arith.constant 48 : index
    %c0_49 = arith.constant 0 : index
    %63 = vector.load %arg11[%c48, %c0_49] : memref<496x256xf32, #tpu.memory_space<vmem>>, vector<16x256xf32>
    tpu.vector_store %arg11[%c48, %c0_49], %62 {strides = array<i32>} : memref<496x256xf32, #tpu.memory_space<vmem>>, vector<16x256xf32>,
    %64 = vector.extract_strided_slice %55 {offsets = [0, 102], sizes = [16, 256], strides = [1, 1]} : vector<16x384xf32> to vector<16x256xf32>
    %c64 = arith.constant 64 : index
    %c0_50 = arith.constant 0 : index
    %65 = vector.load %arg11[%c64, %c0_50] : memref<496x256xf32, #tpu.memory_space<vmem>>, vector<16x256xf32>
    tpu.vector_store %arg11[%c64, %c0_50], %64 {strides = array<i32>} : memref<496x256xf32, #tpu.memory_space<vmem>>, vector<16x256xf32>,
    %66 = vector.extract_strided_slice %55 {offsets = [0, 103], sizes = [16, 256], strides = [1, 1]} : vector<16x384xf32> to vector<16x256xf32>
    %c80 = arith.constant 80 : index
    %c0_51 = arith.constant 0 : index
    %67 = vector.load %arg11[%c80, %c0_51] : memref<496x256xf32, #tpu.memory_space<vmem>>, vector<16x256xf32>
    tpu.vector_store %arg11[%c80, %c0_51], %66 {strides = array<i32>} : memref<496x256xf32, #tpu.memory_space<vmem>>, vector<16x256xf32>,
    %68 = vector.extract_strided_slice %55 {offsets = [0, 104], sizes = [16, 256], strides = [1, 1]} : vector<16x384xf32> to vector<16x256xf32>
    %c96 = arith.constant 96 : index
    %c0_52 = arith.constant 0 : index
    %69 = vector.load %arg11[%c96, %c0_52] : memref<496x256xf32, #tpu.memory_space<vmem>>, vector<16x256xf32>
    tpu.vector_store %arg11[%c96, %c0_52], %68 {strides = array<i32>} : memref<496x256xf32, #tpu.memory_space<vmem>>, vector<16x256xf32>,
    %70 = vector.extract_strided_slice %55 {offsets = [0, 105], sizes = [16, 256], strides = [1, 1]} : vector<16x384xf32> to vector<16x256xf32>
    %c112 = arith.constant 112 : index
    %c0_53 = arith.constant 0 : index
    %71 = vector.load %arg11[%c112, %c0_53] : memref<496x256xf32, #tpu.memory_space<vmem>>, vector<16x256xf32>
    tpu.vector_store %arg11[%c112, %c0_53], %70 {strides = array<i32>} : memref<496x256xf32, #tpu.memory_space<vmem>>, vector<16x256xf32>,
    %72 = vector.extract_strided_slice %55 {offsets = [0, 106], sizes = [16, 256], strides = [1, 1]} : vector<16x384xf32> to vector<16x256xf32>
    %c128_54 = arith.constant 128 : index
    %c0_55 = arith.constant 0 : index
    %73 = vector.load %arg11[%c128_54, %c0_55] : memref<496x256xf32, #tpu.memory_space<vmem>>, vector<16x256xf32>
    tpu.vector_store %arg11[%c128_54, %c0_55], %72 {strides = array<i32>} : memref<496x256xf32, #tpu.memory_space<vmem>>, vector<16x256xf32>,
    %74 = vector.extract_strided_slice %55 {offsets = [0, 107], sizes = [16, 256], strides = [1, 1]} : vector<16x384xf32> to vector<16x256xf32>
    %c144 = arith.constant 144 : index
    %c0_56 = arith.constant 0 : index
    %75 = vector.load %arg11[%c144, %c0_56] : memref<496x256xf32, #tpu.memory_space<vmem>>, vector<16x256xf32>
    tpu.vector_store %arg11[%c144, %c0_56], %74 {strides = array<i32>} : memref<496x256xf32, #tpu.memory_space<vmem>>, vector<16x256xf32>,
    %76 = vector.extract_strided_slice %55 {offsets = [0, 108], sizes = [16, 256], strides = [1, 1]} : vector<16x384xf32> to vector<16x256xf32>
    %c160 = arith.constant 160 : index
    %c0_57 = arith.constant 0 : index
    %77 = vector.load %arg11[%c160, %c0_57] : memref<496x256xf32, #tpu.memory_space<vmem>>, vector<16x256xf32>
    tpu.vector_store %arg11[%c160, %c0_57], %76 {strides = array<i32>} : memref<496x256xf32, #tpu.memory_space<vmem>>, vector<16x256xf32>,
    %78 = vector.extract_strided_slice %55 {offsets = [0, 109], sizes = [16, 256], strides = [1, 1]} : vector<16x384xf32> to vector<16x256xf32>
    %c176 = arith.constant 176 : index
    %c0_58 = arith.constant 0 : index
    %79 = vector.load %arg11[%c176, %c0_58] : memref<496x256xf32, #tpu.memory_space<vmem>>, vector<16x256xf32>
    tpu.vector_store %arg11[%c176, %c0_58], %78 {strides = array<i32>} : memref<496x256xf32, #tpu.memory_space<vmem>>, vector<16x256xf32>,
    %80 = vector.extract_strided_slice %55 {offsets = [0, 110], sizes = [16, 256], strides = [1, 1]} : vector<16x384xf32> to vector<16x256xf32>
    %c192 = arith.constant 192 : index
    %c0_59 = arith.constant 0 : index
    %81 = vector.load %arg11[%c192, %c0_59] : memref<496x256xf32, #tpu.memory_space<vmem>>, vector<16x256xf32>
    tpu.vector_store %arg11[%c192, %c0_59], %80 {strides = array<i32>} : memref<496x256xf32, #tpu.memory_space<vmem>>, vector<16x256xf32>,
    %82 = vector.extract_strided_slice %55 {offsets = [0, 111], sizes = [16, 256], strides = [1, 1]} : vector<16x384xf32> to vector<16x256xf32>
    %c208 = arith.constant 208 : index
    %c0_60 = arith.constant 0 : index
    %83 = vector.load %arg11[%c208, %c0_60] : memref<496x256xf32, #tpu.memory_space<vmem>>, vector<16x256xf32>
    tpu.vector_store %arg11[%c208, %c0_60], %82 {strides = array<i32>} : memref<496x256xf32, #tpu.memory_space<vmem>>, vector<16x256xf32>,
    %84 = vector.extract_strided_slice %55 {offsets = [0, 112], sizes = [16, 256], strides = [1, 1]} : vector<16x384xf32> to vector<16x256xf32>
    %c224 = arith.constant 224 : index
    %c0_61 = arith.constant 0 : index
    %85 = vector.load %arg11[%c224, %c0_61] : memref<496x256xf32, #tpu.memory_space<vmem>>, vector<16x256xf32>
    tpu.vector_store %arg11[%c224, %c0_61], %84 {strides = array<i32>} : memref<496x256xf32, #tpu.memory_space<vmem>>, vector<16x256xf32>,
    %86 = vector.extract_strided_slice %55 {offsets = [0, 113], sizes = [16, 256], strides = [1, 1]} : vector<16x384xf32> to vector<16x256xf32>
    %c240 = arith.constant 240 : index
    %c0_62 = arith.constant 0 : index
    %87 = vector.load %arg11[%c240, %c0_62] : memref<496x256xf32, #tpu.memory_space<vmem>>, vector<16x256xf32>
    tpu.vector_store %arg11[%c240, %c0_62], %86 {strides = array<i32>} : memref<496x256xf32, #tpu.memory_space<vmem>>, vector<16x256xf32>,
    %88 = vector.extract_strided_slice %55 {offsets = [0, 114], sizes = [16, 256], strides = [1, 1]} : vector<16x384xf32> to vector<16x256xf32>
    %c256 = arith.constant 256 : index
    %c0_63 = arith.constant 0 : index
    %89 = vector.load %arg11[%c256, %c0_63] : memref<496x256xf32, #tpu.memory_space<vmem>>, vector<16x256xf32>
    tpu.vector_store %arg11[%c256, %c0_63], %88 {strides = array<i32>} : memref<496x256xf32, #tpu.memory_space<vmem>>, vector<16x256xf32>,
    %90 = vector.extract_strided_slice %55 {offsets = [0, 115], sizes = [16, 256], strides = [1, 1]} : vector<16x384xf32> to vector<16x256xf32>
    %c272 = arith.constant 272 : index
    %c0_64 = arith.constant 0 : index
    %91 = vector.load %arg11[%c272, %c0_64] : memref<496x256xf32, #tpu.memory_space<vmem>>, vector<16x256xf32>
    tpu.vector_store %arg11[%c272, %c0_64], %90 {strides = array<i32>} : memref<496x256xf32, #tpu.memory_space<vmem>>, vector<16x256xf32>,
    %92 = vector.extract_strided_slice %55 {offsets = [0, 116], sizes = [16, 256], strides = [1, 1]} : vector<16x384xf32> to vector<16x256xf32>
    %c288 = arith.constant 288 : index
    %c0_65 = arith.constant 0 : index
    %93 = vector.load %arg11[%c288, %c0_65] : memref<496x256xf32, #tpu.memory_space<vmem>>, vector<16x256xf32>
    tpu.vector_store %arg11[%c288, %c0_65], %92 {strides = array<i32>} : memref<496x256xf32, #tpu.memory_space<vmem>>, vector<16x256xf32>,
    %94 = vector.extract_strided_slice %55 {offsets = [0, 117], sizes = [16, 256], strides = [1, 1]} : vector<16x384xf32> to vector<16x256xf32>
    %c304 = arith.constant 304 : index
    %c0_66 = arith.constant 0 : index
    %95 = vector.load %arg11[%c304, %c0_66] : memref<496x256xf32, #tpu.memory_space<vmem>>, vector<16x256xf32>
    tpu.vector_store %arg11[%c304, %c0_66], %94 {strides = array<i32>} : memref<496x256xf32, #tpu.memory_space<vmem>>, vector<16x256xf32>,
    %96 = vector.extract_strided_slice %55 {offsets = [0, 118], sizes = [16, 256], strides = [1, 1]} : vector<16x384xf32> to vector<16x256xf32>
    %c320 = arith.constant 320 : index
    %c0_67 = arith.constant 0 : index
    %97 = vector.load %arg11[%c320, %c0_67] : memref<496x256xf32, #tpu.memory_space<vmem>>, vector<16x256xf32>
    tpu.vector_store %arg11[%c320, %c0_67], %96 {strides = array<i32>} : memref<496x256xf32, #tpu.memory_space<vmem>>, vector<16x256xf32>,
    %98 = vector.extract_strided_slice %55 {offsets = [0, 119], sizes = [16, 256], strides = [1, 1]} : vector<16x384xf32> to vector<16x256xf32>
    %c336 = arith.constant 336 : index
    %c0_68 = arith.constant 0 : index
    %99 = vector.load %arg11[%c336, %c0_68] : memref<496x256xf32, #tpu.memory_space<vmem>>, vector<16x256xf32>
    tpu.vector_store %arg11[%c336, %c0_68], %98 {strides = array<i32>} : memref<496x256xf32, #tpu.memory_space<vmem>>, vector<16x256xf32>,
    %100 = vector.extract_strided_slice %55 {offsets = [0, 120], sizes = [16, 256], strides = [1, 1]} : vector<16x384xf32> to vector<16x256xf32>
    %c352 = arith.constant 352 : index
    %c0_69 = arith.constant 0 : index
    %101 = vector.load %arg11[%c352, %c0_69] : memref<496x256xf32, #tpu.memory_space<vmem>>, vector<16x256xf32>
    tpu.vector_store %arg11[%c352, %c0_69], %100 {strides = array<i32>} : memref<496x256xf32, #tpu.memory_space<vmem>>, vector<16x256xf32>,
    %102 = vector.extract_strided_slice %55 {offsets = [0, 121], sizes = [16, 256], strides = [1, 1]} : vector<16x384xf32> to vector<16x256xf32>
    %c368 = arith.constant 368 : index
    %c0_70 = arith.constant 0 : index
    %103 = vector.load %arg11[%c368, %c0_70] : memref<496x256xf32, #tpu.memory_space<vmem>>, vector<16x256xf32>
    tpu.vector_store %arg11[%c368, %c0_70], %102 {strides = array<i32>} : memref<496x256xf32, #tpu.memory_space<vmem>>, vector<16x256xf32>,
    %104 = vector.extract_strided_slice %55 {offsets = [0, 122], sizes = [16, 256], strides = [1, 1]} : vector<16x384xf32> to vector<16x256xf32>
    %c384 = arith.constant 384 : index
    %c0_71 = arith.constant 0 : index
    %105 = vector.load %arg11[%c384, %c0_71] : memref<496x256xf32, #tpu.memory_space<vmem>>, vector<16x256xf32>
    tpu.vector_store %arg11[%c384, %c0_71], %104 {strides = array<i32>} : memref<496x256xf32, #tpu.memory_space<vmem>>, vector<16x256xf32>,
    %106 = vector.extract_strided_slice %55 {offsets = [0, 123], sizes = [16, 256], strides = [1, 1]} : vector<16x384xf32> to vector<16x256xf32>
    %c400 = arith.constant 400 : index
    %c0_72 = arith.constant 0 : index
    %107 = vector.load %arg11[%c400, %c0_72] : memref<496x256xf32, #tpu.memory_space<vmem>>, vector<16x256xf32>
    tpu.vector_store %arg11[%c400, %c0_72], %106 {strides = array<i32>} : memref<496x256xf32, #tpu.memory_space<vmem>>, vector<16x256xf32>,
    %108 = vector.extract_strided_slice %55 {offsets = [0, 124], sizes = [16, 256], strides = [1, 1]} : vector<16x384xf32> to vector<16x256xf32>
    %c416 = arith.constant 416 : index
    %c0_73 = arith.constant 0 : index
    %109 = vector.load %arg11[%c416, %c0_73] : memref<496x256xf32, #tpu.memory_space<vmem>>, vector<16x256xf32>
    tpu.vector_store %arg11[%c416, %c0_73], %108 {strides = array<i32>} : memref<496x256xf32, #tpu.memory_space<vmem>>, vector<16x256xf32>,
    %110 = vector.extract_strided_slice %55 {offsets = [0, 125], sizes = [16, 256], strides = [1, 1]} : vector<16x384xf32> to vector<16x256xf32>
    %c432 = arith.constant 432 : index
    %c0_74 = arith.constant 0 : index
    %111 = vector.load %arg11[%c432, %c0_74] : memref<496x256xf32, #tpu.memory_space<vmem>>, vector<16x256xf32>
    tpu.vector_store %arg11[%c432, %c0_74], %110 {strides = array<i32>} : memref<496x256xf32, #tpu.memory_space<vmem>>, vector<16x256xf32>,
    %112 = vector.extract_strided_slice %55 {offsets = [0, 126], sizes = [16, 256], strides = [1, 1]} : vector<16x384xf32> to vector<16x256xf32>
    %c448 = arith.constant 448 : index
    %c0_75 = arith.constant 0 : index
    %113 = vector.load %arg11[%c448, %c0_75] : memref<496x256xf32, #tpu.memory_space<vmem>>, vector<16x256xf32>
    tpu.vector_store %arg11[%c448, %c0_75], %112 {strides = array<i32>} : memref<496x256xf32, #tpu.memory_space<vmem>>, vector<16x256xf32>,
    %114 = vector.extract_strided_slice %55 {offsets = [0, 127], sizes = [16, 256], strides = [1, 1]} : vector<16x384xf32> to vector<16x256xf32>
    %c464 = arith.constant 464 : index
    %c0_76 = arith.constant 0 : index
    %115 = vector.load %arg11[%c464, %c0_76] : memref<496x256xf32, #tpu.memory_space<vmem>>, vector<16x256xf32>
    tpu.vector_store %arg11[%c464, %c0_76], %114 {strides = array<i32>} : memref<496x256xf32, #tpu.memory_space<vmem>>, vector<16x256xf32>,
    %116 = vector.extract_strided_slice %55 {offsets = [0, 128], sizes = [16, 256], strides = [1, 1]} : vector<16x384xf32> to vector<16x256xf32>
    %c480 = arith.constant 480 : index
    %c0_77 = arith.constant 0 : index
    %117 = vector.load %arg11[%c480, %c0_77] : memref<496x256xf32, #tpu.memory_space<vmem>>, vector<16x256xf32>
    tpu.vector_store %arg11[%c480, %c0_77], %116 {strides = array<i32>} : memref<496x256xf32, #tpu.memory_space<vmem>>, vector<16x256xf32>,
    %c0_78 = arith.constant 0 : index
    %c0_79 = arith.constant 0 : index
    %118 = vector.load %arg5[%c0_78, %c0_79] : memref<4x496xf32, #tpu.memory_space<vmem>>, vector<4x496xf32>
    %c0_80 = arith.constant 0 : index
    %c0_81 = arith.constant 0 : index
    %119 = vector.load %arg11[%c0_80, %c0_81] : memref<496x256xf32, #tpu.memory_space<vmem>>, vector<496x256xf32>
    %cst_82 = arith.constant dense<0.000000e+00> : vector<4x256xf32>
    %120 = tpu.matmul %118, %119, %cst_82 {dimension_numbers = #tpu.dot_dimension_numbers<[1], [0], [0], [1], [0, 0, 1, 1], [], []>} : vector<4x496xf32>, vector<496x256xf32>, vector<4x256xf32> -> vector<4x256xf32>
    %c0_83 = arith.constant 0 : index
    %c0_84 = arith.constant 0 : index
    %121 = vector.load %arg6[%c0_83, %c0_84] : memref<4x256xf32, #tpu.memory_space<vmem>>, vector<4x256xf32>
    %122 = arith.addf %120, %121 : vector<4x256xf32>
    %123 = vector.extract_strided_slice %122 {offsets = [0, 0], sizes = [4, 200], strides = [1, 1]} : vector<4x256xf32> to vector<4x200xf32>
    %c0_85 = arith.constant 0 : index
    %c0_86 = arith.constant 0 : index
    %c0_87 = arith.constant 0 : index
    %124 = vector.load %arg7[%c0_85, %c0_86, %c0_87] : memref<1x4x200xf32, #tpu.memory_space<vmem>>, vector<1x4x200xf32>
    %125 = vector.shape_cast %124 : vector<1x4x200xf32> to vector<4x200xf32>
    %126 = vector.shape_cast %123 : vector<4x200xf32> to vector<1x4x200xf32>
    tpu.vector_store %arg7[%c0_85, %c0_86, %c0_87], %126 {strides = array<i32>} : memref<1x4x200xf32, #tpu.memory_space<vmem>>, vector<1x4x200xf32>,
    return
  }
}

</mosaic_0001>

<llo_original>
// kernel: tpu_custom_call.1
$region0: #{tpu_custom_call.1}
  #allocation0 [shape = 'u32[]', space=smem, size = 0x4, offset = 0x4, fixed_abs, tag = 'smem constant byte address 0x4 - core index']
  #allocation1 [shape = 'u32[72,128]{1,0:T(1,128)}', space=vmem, size = 0x9000, scoped, tag = 'internal scratch']
  #allocation2 [shape = 'f32[4,384]{1,0:T(4,128)}', space=vmem, size = 0x1800, scoped, tag = 'scratch operand']
  #allocation3 [shape = 'f32[44,256]{1,0:T(8,128)}', space=vmem, size = 0xc000, scoped, tag = 'scratch operand']
  #allocation4 [shape = 'f32[16,384]{1,0:T(8,128)}', space=vmem, size = 0x6000, scoped, tag = 'scratch operand']
  #allocation5 [shape = 'f32[496,256]{1,0:T(8,128)}', space=vmem, size = 0x7c000, scoped, tag = 'scratch operand']
  %s0 = inlined_call_operand.hbm [shape: f32[1,20], index: 0, kind: input, shape index: {}]
  %s1 = inlined_call_operand.hbm [shape: f32[20,1024], index: 1, kind: input, shape index: {}]
  %s2 = inlined_call_operand.hbm [shape: f32[1,1024], index: 2, kind: input, shape index: {}]
  %s3 = inlined_call_operand.hbm [shape: f32[16,44], index: 3, kind: input, shape index: {}]
  %s4 = inlined_call_operand.hbm [shape: f32[16,256], index: 4, kind: input, shape index: {}]
  %s5 = inlined_call_operand.hbm [shape: f32[4,496], index: 5, kind: input, shape index: {}]
  %s6 = inlined_call_operand.hbm [shape: f32[4,256], index: 6, kind: input, shape index: {}]
  %s7 = inlined_call_operand.hbm [shape: f32[1,4,200], index: 7, kind: output, shape index: {}]
  %s8 = sld [smem:[#allocation0]]
  $region66: #{tpu_custom_call.1} parent=0
    _
  %s10 = ssub.s32 1, %s8
  %s11 = scalar_select 0, %s10, %s8
  $region1: #{tpu_custom_call.1} parent=0
    #allocation6 [shape = 'u8[512]{0}', space=vmem, size = 0x400, scoped, tag = 'input window, operand 0, single buffered']
    #allocation7 [shape = 's32[1]{0}', space=sflag, size = 0x4, scoped, tag = 'scoped memory for tpu_custom_call.1']
    #allocation8 [shape = 's32[1]{0}', space=sflag, size = 0x4, scoped, tag = 'scoped memory for tpu_custom_call.1']
    #allocation9 [shape = 'u8[98304]{0}', space=vmem, size = 0x18000, scoped, tag = 'input window, operand 1, single buffered']
    #allocation10 [shape = 's32[1]{0}', space=sflag, size = 0x4, scoped, tag = 'scoped memory for tpu_custom_call.1']
    #allocation11 [shape = 'u8[4096]{0}', space=vmem, size = 0x1000, scoped, tag = 'input window, operand 2, single buffered']
    #allocation12 [shape = 'u8[8192]{0}', space=vmem, size = 0x2000, scoped, tag = 'input window, operand 3, single buffered']
    #allocation13 [shape = 's32[1]{0}', space=sflag, size = 0x4, scoped, tag = 'scoped memory for tpu_custom_call.1']
    #allocation14 [shape = 'u8[16384]{0}', space=vmem, size = 0x4000, scoped, tag = 'input window, operand 4, single buffered']
    #allocation15 [shape = 'u8[8192]{0}', space=vmem, size = 0x2000, scoped, tag = 'input window, operand 5, single buffered']
    #allocation16 [shape = 's32[1]{0}', space=sflag, size = 0x4, scoped, tag = 'scoped memory for tpu_custom_call.1']
    #allocation17 [shape = 'u8[4096]{0}', space=vmem, size = 0x1000, scoped, tag = 'input window, operand 6, single buffered']
    #allocation18 [shape = 'u8[4096]{0}', space=vmem, size = 0x1000, scoped, tag = 'output window, operand 0, single buffered']
    %12 = vsyncpa [#allocation7], 0
    %13 = vsyncpa [#allocation10], 0
    %14 = vsyncpa [#allocation13], 0
    %15 = vsyncpa [#allocation16], 0
    %16 = vsyncpa [#allocation8], 0
    // Predicated region
    $region2: #{tpu_custom_call.1} parent=1 // pred_check
      _
    $region3: #{tpu_custom_call.1} parent=1 // pred_check_branch
      %18 = sbr.rel (0) target = $region5
    $region4: #{tpu_custom_call.1} parent=1 // pred_region
      %20 = vsyncadd [#allocation7], 0
      %s22 = sshll.u32 %s0, 4
      %s23 = int_to_ptr.hbm [resolvable:$true] %s22
      %s24 = sshll.u32 [#allocation6], 4
      %s25 = int_to_ptr.vmem [resolvable:$true] %s24
      %27 = dma.hbm_to_vmem [thread:$0]  %s23, 16, %s25, [#allocation7]
    $region5: #{tpu_custom_call.1} parent=1 // pred_fallthru
      _
    // Predicated region
    $region6: #{tpu_custom_call.1} parent=1 // pred_check
      _
    $region7: #{tpu_custom_call.1} parent=1 // pred_check_branch
      %29 = sbr.rel (0) target = $region9
    $region8: #{tpu_custom_call.1} parent=1 // pred_region
      %31 = vsyncadd [#allocation10], 0
      %s32 = sshll.u32 %s1, 4
      %s33 = int_to_ptr.hbm [resolvable:$true] %s32
      %s34 = sshll.u32 [#allocation9], 4
      %s35 = int_to_ptr.vmem [resolvable:$true] %s34
      %40 = dma.hbm_to_vmem [thread:$0]  %s33, 3072, %s35, [#allocation10], 1024, 1024, 64
    $region9: #{tpu_custom_call.1} parent=1 // pred_fallthru
      _
    // Predicated region
    $region10: #{tpu_custom_call.1} parent=1 // pred_check
      _
    $region11: #{tpu_custom_call.1} parent=1 // pred_check_branch
      %42 = sbr.rel (0) target = $region13
    $region12: #{tpu_custom_call.1} parent=1 // pred_region
      %44 = vsyncadd [#allocation10], 0
      %s46 = sshll.u32 %s2, 4
      %s47 = int_to_ptr.hbm [resolvable:$true] %s46
      %s48 = sshll.u32 [#allocation11], 4
      %s49 = int_to_ptr.vmem [resolvable:$true] %s48
      %51 = dma.hbm_to_vmem [thread:$0]  %s47, 128, %s49, [#allocation10]
    $region13: #{tpu_custom_call.1} parent=1 // pred_fallthru
      _
    // Predicated region
    $region14: #{tpu_custom_call.1} parent=1 // pred_check
      _
    $region15: #{tpu_custom_call.1} parent=1 // pred_check_branch
      %53 = sbr.rel (0) target = $region17
    $region16: #{tpu_custom_call.1} parent=1 // pred_region
      %55 = vsyncadd [#allocation13], 0
      %s56 = sshll.u32 %s3, 4
      %s57 = int_to_ptr.hbm [resolvable:$true] %s56
      %s58 = sshll.u32 [#allocation12], 4
      %s59 = int_to_ptr.vmem [resolvable:$true] %s58
      %64 = dma.hbm_to_vmem [thread:$0]  %s57, 256, %s59, [#allocation13], 128, 128, 8
    $region17: #{tpu_custom_call.1} parent=1 // pred_fallthru
      _
    // Predicated region
    $region18: #{tpu_custom_call.1} parent=1 // pred_check
      _
    $region19: #{tpu_custom_call.1} parent=1 // pred_check_branch
      %66 = sbr.rel (0) target = $region21
    $region20: #{tpu_custom_call.1} parent=1 // pred_region
      %68 = vsyncadd [#allocation13], 0
      %s69 = sshll.u32 %s4, 4
      %s70 = int_to_ptr.hbm [resolvable:$true] %s69
      %s71 = sshll.u32 [#allocation14], 4
      %s72 = int_to_ptr.vmem [resolvable:$true] %s71
      %77 = dma.hbm_to_vmem [thread:$0]  %s70, 512, %s72, [#allocation13], 256, 256, 16
    $region21: #{tpu_custom_call.1} parent=1 // pred_fallthru
      _
    // Predicated region
    $region22: #{tpu_custom_call.1} parent=1 // pred_check
      _
    $region23: #{tpu_custom_call.1} parent=1 // pred_check_branch
      %79 = sbr.rel (0) target = $region25
    $region24: #{tpu_custom_call.1} parent=1 // pred_region
      %81 = vsyncadd [#allocation16], 0
      %s83 = sshll.u32 %s5, 4
      %s84 = int_to_ptr.hbm [resolvable:$true] %s83
      %s85 = sshll.u32 [#allocation15], 4
      %s86 = int_to_ptr.vmem [resolvable:$true] %s85
      %88 = dma.hbm_to_vmem [thread:$0]  %s84, 256, %s86, [#allocation16]
    $region25: #{tpu_custom_call.1} parent=1 // pred_fallthru
      _
    // Predicated region
    $region26: #{tpu_custom_call.1} parent=1 // pred_check
      _
    $region27: #{tpu_custom_call.1} parent=1 // pred_check_branch
      %90 = sbr.rel (0) target = $region29
    $region28: #{tpu_custom_call.1} parent=1 // pred_region
      %92 = vsyncadd [#allocation16], 0
      %s94 = sshll.u32 %s6, 4
      %s95 = int_to_ptr.hbm [resolvable:$true] %s94
      %s96 = sshll.u32 [#allocation17], 4
      %s97 = int_to_ptr.vmem [resolvable:$true] %s96
      %99 = dma.hbm_to_vmem [thread:$0]  %s95, 128, %s97, [#allocation16]
    $region29: #{tpu_custom_call.1} parent=1 // pred_fallthru
      _
    // Predicated region
    $region30: #{tpu_custom_call.1} parent=1 // pred_check
      _
    $region31: #{tpu_custom_call.1} parent=1 // pred_check_branch
      %101 = sbr.rel (0) target = $region33
    $region32: #{tpu_custom_call.1} parent=1 // pred_region
      %103 = dma.done [#allocation7], 16
    $region33: #{tpu_custom_call.1} parent=1 // pred_fallthru
      _
    // Predicated region
    $region34: #{tpu_custom_call.1} parent=1 // pred_check
      _
    $region35: #{tpu_custom_call.1} parent=1 // pred_check_branch
      %105 = sbr.rel (0) target = $region37
    $region36: #{tpu_custom_call.1} parent=1 // pred_region
      %107 = dma.done [#allocation10], 3072
    $region37: #{tpu_custom_call.1} parent=1 // pred_fallthru
      _
    // Predicated region
    $region38: #{tpu_custom_call.1} parent=1 // pred_check
      _
    $region39: #{tpu_custom_call.1} parent=1 // pred_check_branch
      %109 = sbr.rel (0) target = $region41
    $region40: #{tpu_custom_call.1} parent=1 // pred_region
      %111 = dma.done [#allocation10], 128
    $region41: #{tpu_custom_call.1} parent=1 // pred_fallthru
      _
    // Predicated region
    $region42: #{tpu_custom_call.1} parent=1 // pred_check
      _
    $region43: #{tpu_custom_call.1} parent=1 // pred_check_branch
      %113 = sbr.rel (0) target = $region45
    $region44: #{tpu_custom_call.1} parent=1 // pred_region
      %115 = dma.done [#allocation13], 256
    $region45: #{tpu_custom_call.1} parent=1 // pred_fallthru
      _
    // Predicated region
    $region46: #{tpu_custom_call.1} parent=1 // pred_check
      _
    $region47: #{tpu_custom_call.1} parent=1 // pred_check_branch
      %117 = sbr.rel (0) target = $region49
    $region48: #{tpu_custom_call.1} parent=1 // pred_region
      %119 = dma.done [#allocation13], 512
    $region49: #{tpu_custom_call.1} parent=1 // pred_fallthru
      _
    // Predicated region
    $region50: #{tpu_custom_call.1} parent=1 // pred_check
      _
    $region51: #{tpu_custom_call.1} parent=1 // pred_check_branch
      %121 = sbr.rel (0) target = $region53
    $region52: #{tpu_custom_call.1} parent=1 // pred_region
      %123 = dma.done [#allocation16], 256
    $region53: #{tpu_custom_call.1} parent=1 // pred_fallthru
      _
    // Predicated region
    $region54: #{tpu_custom_call.1} parent=1 // pred_check
      _
    $region55: #{tpu_custom_call.1} parent=1 // pred_check_branch
      %125 = sbr.rel (0) target = $region57
    $region56: #{tpu_custom_call.1} parent=1 // pred_region
      %127 = dma.done [#allocation16], 128
    $region57: #{tpu_custom_call.1} parent=1 // pred_fallthru
      _
    %v128 = vld [vmem:[#allocation6] sm:$0x1]
    %v129 = vld [vmem:[#allocation9] sm:$0xff]
    %v130 = vld [vmem:[#allocation9 + $0x8] sm:$0xff]
    %v131 = vld [vmem:[#allocation9 + $0x10] sm:$0xff]
    %v132 = vld [vmem:[#allocation9 + $0x18] sm:$0xff]
    %v133 = vld [vmem:[#allocation9 + $0x20] sm:$0xff]
    %v134 = vld [vmem:[#allocation9 + $0x28] sm:$0xff]
    %v135 = vld [vmem:[#allocation9 + $0x30] sm:$0xff]
    %v136 = vld [vmem:[#allocation9 + $0x38] sm:$0xff]
    %v137 = vld [vmem:[#allocation9 + $0x40] sm:$0xff]
    %v138 = vld [vmem:[#allocation9 + $0x48] sm:$0xff]
    %v139 = vld [vmem:[#allocation9 + $0x50] sm:$0xff]
    %v140 = vld [vmem:[#allocation9 + $0x58] sm:$0xff]
    %v141 = vld [vmem:[#allocation9 + $0x60] sm:$0xff]
    %v142 = vld [vmem:[#allocation9 + $0x68] sm:$0xff]
    %v143 = vld [vmem:[#allocation9 + $0x70] sm:$0xff]
    %v144 = vld [vmem:[#allocation9 + $0x78] sm:$0xff]
    %v145 = vld [vmem:[#allocation9 + $0x80] sm:$0xf]
    %v146 = vld [vmem:[#allocation9 + $0x88] sm:$0xf]
    %v147 = vld [vmem:[#allocation9 + $0x90] sm:$0xf]
    %v148 = vld [vmem:[#allocation9 + $0x98] sm:$0xf]
    %v149 = vld [vmem:[#allocation9 + $0xa0] sm:$0xf]
    %v150 = vld [vmem:[#allocation9 + $0xa8] sm:$0xf]
    %v151 = vld [vmem:[#allocation9 + $0xb0] sm:$0xf]
    %v152 = vld [vmem:[#allocation9 + $0xb8] sm:$0xf]
    %v153 = vld [vmem:[#allocation11] sm:$0xff]
    %v155 = vperm.slane %v153, 0
    %v156 = vperm.slane %v153, 1
    %v157 = vperm.slane %v153, 2
    %v158 = vperm.slane %v153, 3
    %v159 = vperm.slane %v153, 4
    %v160 = vperm.slane %v153, 5
    %v161 = vperm.slane %v153, 6
    %v162 = vperm.slane %v153, 7
    %vm171 = vcmask 162816
    %v173 = vsel %vm171, %v128, 0
    %vm175 = vcmask 1043456
    %v177 = vsel %vm175, %v145, 0
    %v180 = vsel %vm175, %v146, 0
    %v183 = vsel %vm175, %v147, 0
    %v186 = vsel %vm175, %v148, 0
    %v189 = vsel %vm175, %v149, 0
    %v192 = vsel %vm175, %v150, 0
    %v195 = vsel %vm175, %v151, 0
    %v198 = vsel %vm175, %v152, 0
    %200 = vmatpush.msra.mxu0 0.0
    %201 = vmatpush.msra.mxu0 0.0
    %202 = vmatpush.msra.mxu0 0.0
    %203 = vmatpush.msra.mxu0 0.0
    %204 = vmatpush.msra.mxu0 0.0
    %205 = vmatpush.msra.mxu0 0.0
    %206 = vmatpush.msra.mxu0 0.0
    %207 = vmatpush.msra.mxu0 0.0
    %208 = vmatpush.msra.mxu0 0.0
    %209 = vmatpush.msra.mxu0 0.0
    %210 = vmatpush.msra.mxu0 0.0
    %211 = vmatpush.msra.mxu0 0.0
    %212 = vmatpush.msra.mxu0 0.0
    %213 = vmatpush.msra.mxu0 %v177
    %214 = vmatpush.msra.mxu0 %v137
    %215 = vmatpush.msra.mxu0 %v129
    %216 = vmatmul.f32.gmra.mxu0 %v173
    %v217 = vpop.f32.mrf.mxu0
    %v218 = vadd.f32 %v155, %v217
    %219 = vdwg.mxu0
    %220 = vmatpush.msra.mxu0 0.0
    %221 = vmatpush.msra.mxu0 0.0
    %222 = vmatpush.msra.mxu0 0.0
    %223 = vmatpush.msra.mxu0 0.0
    %224 = vmatpush.msra.mxu0 0.0
    %225 = vmatpush.msra.mxu0 0.0
    %226 = vmatpush.msra.mxu0 0.0
    %227 = vmatpush.msra.mxu0 0.0
    %228 = vmatpush.msra.mxu0 0.0
    %229 = vmatpush.msra.mxu0 0.0
    %230 = vmatpush.msra.mxu0 0.0
    %231 = vmatpush.msra.mxu0 0.0
    %232 = vmatpush.msra.mxu0 0.0
    %233 = vmatpush.msra.mxu0 %v180
    %234 = vmatpush.msra.mxu0 %v138
    %235 = vmatpush.msra.mxu0 %v130
    %236 = vmatmul.f32.gmra.mxu0 %v173
    %v237 = vpop.f32.mrf.mxu0
    %v238 = vadd.f32 %v156, %v237
    %239 = vdwg.mxu0
    %240 = vmatpush.msra.mxu0 0.0
    %241 = vmatpush.msra.mxu0 0.0
    %242 = vmatpush.msra.mxu0 0.0
    %243 = vmatpush.msra.mxu0 0.0
    %244 = vmatpush.msra.mxu0 0.0
    %245 = vmatpush.msra.mxu0 0.0
    %246 = vmatpush.msra.mxu0 0.0
    %247 = vmatpush.msra.mxu0 0.0
    %248 = vmatpush.msra.mxu0 0.0
    %249 = vmatpush.msra.mxu0 0.0
    %250 = vmatpush.msra.mxu0 0.0
    %251 = vmatpush.msra.mxu0 0.0
    %252 = vmatpush.msra.mxu0 0.0
    %253 = vmatpush.msra.mxu0 %v183
    %254 = vmatpush.msra.mxu0 %v139
    %255 = vmatpush.msra.mxu0 %v131
    %256 = vmatmul.f32.gmra.mxu0 %v173
    %v257 = vpop.f32.mrf.mxu0
    %v258 = vadd.f32 %v157, %v257
    %259 = vdwg.mxu0
    %260 = vmatpush.msra.mxu0 0.0
    %261 = vmatpush.msra.mxu0 0.0
    %262 = vmatpush.msra.mxu0 0.0
    %263 = vmatpush.msra.mxu0 0.0
    %264 = vmatpush.msra.mxu0 0.0
    %265 = vmatpush.msra.mxu0 0.0
    %266 = vmatpush.msra.mxu0 0.0
    %267 = vmatpush.msra.mxu0 0.0
    %268 = vmatpush.msra.mxu0 0.0
    %269 = vmatpush.msra.mxu0 0.0
    %270 = vmatpush.msra.mxu0 0.0
    %271 = vmatpush.msra.mxu0 0.0
    %272 = vmatpush.msra.mxu0 0.0
    %273 = vmatpush.msra.mxu0 %v186
    %274 = vmatpush.msra.mxu0 %v140
    %275 = vmatpush.msra.mxu0 %v132
    %276 = vmatmul.f32.gmra.mxu0 %v173
    %v277 = vpop.f32.mrf.mxu0
    %v278 = vadd.f32 %v158, %v277
    %279 = vdwg.mxu0
    %280 = vmatpush.msra.mxu0 0.0
    %281 = vmatpush.msra.mxu0 0.0
    %282 = vmatpush.msra.mxu0 0.0
    %283 = vmatpush.msra.mxu0 0.0
    %284 = vmatpush.msra.mxu0 0.0
    %285 = vmatpush.msra.mxu0 0.0
    %286 = vmatpush.msra.mxu0 0.0
    %287 = vmatpush.msra.mxu0 0.0
    %288 = vmatpush.msra.mxu0 0.0
    %289 = vmatpush.msra.mxu0 0.0
    %290 = vmatpush.msra.mxu0 0.0
    %291 = vmatpush.msra.mxu0 0.0
    %292 = vmatpush.msra.mxu0 0.0
    %293 = vmatpush.msra.mxu0 %v189
    %294 = vmatpush.msra.mxu0 %v141
    %295 = vmatpush.msra.mxu0 %v133
    %296 = vmatmul.f32.gmra.mxu0 %v173
    %v297 = vpop.f32.mrf.mxu0
    %v298 = vadd.f32 %v159, %v297
    %299 = vdwg.mxu0
    %300 = vmatpush.msra.mxu0 0.0
    %301 = vmatpush.msra.mxu0 0.0
    %302 = vmatpush.msra.mxu0 0.0
    %303 = vmatpush.msra.mxu0 0.0
    %304 = vmatpush.msra.mxu0 0.0
    %305 = vmatpush.msra.mxu0 0.0
    %306 = vmatpush.msra.mxu0 0.0
    %307 = vmatpush.msra.mxu0 0.0
    %308 = vmatpush.msra.mxu0 0.0
    %309 = vmatpush.msra.mxu0 0.0
    %310 = vmatpush.msra.mxu0 0.0
    %311 = vmatpush.msra.mxu0 0.0
    %312 = vmatpush.msra.mxu0 0.0
    %313 = vmatpush.msra.mxu0 %v192
    %314 = vmatpush.msra.mxu0 %v142
    %315 = vmatpush.msra.mxu0 %v134
    %316 = vmatmul.f32.gmra.mxu0 %v173
    %v317 = vpop.f32.mrf.mxu0
    %v318 = vadd.f32 %v160, %v317
    %319 = vdwg.mxu0
    %320 = vmatpush.msra.mxu0 0.0
    %321 = vmatpush.msra.mxu0 0.0
    %322 = vmatpush.msra.mxu0 0.0
    %323 = vmatpush.msra.mxu0 0.0
    %324 = vmatpush.msra.mxu0 0.0
    %325 = vmatpush.msra.mxu0 0.0
    %326 = vmatpush.msra.mxu0 0.0
    %327 = vmatpush.msra.mxu0 0.0
    %328 = vmatpush.msra.mxu0 0.0
    %329 = vmatpush.msra.mxu0 0.0
    %330 = vmatpush.msra.mxu0 0.0
    %331 = vmatpush.msra.mxu0 0.0
    %332 = vmatpush.msra.mxu0 0.0
    %333 = vmatpush.msra.mxu0 %v195
    %334 = vmatpush.msra.mxu0 %v143
    %335 = vmatpush.msra.mxu0 %v135
    %336 = vmatmul.f32.gmra.mxu0 %v173
    %v337 = vpop.f32.mrf.mxu0
    %v338 = vadd.f32 %v161, %v337
    %339 = vdwg.mxu0
    %340 = vmatpush.msra.mxu0 0.0
    %341 = vmatpush.msra.mxu0 0.0
    %342 = vmatpush.msra.mxu0 0.0
    %343 = vmatpush.msra.mxu0 0.0
    %344 = vmatpush.msra.mxu0 0.0
    %345 = vmatpush.msra.mxu0 0.0
    %346 = vmatpush.msra.mxu0 0.0
    %347 = vmatpush.msra.mxu0 0.0
    %348 = vmatpush.msra.mxu0 0.0
    %349 = vmatpush.msra.mxu0 0.0
    %350 = vmatpush.msra.mxu0 0.0
    %351 = vmatpush.msra.mxu0 0.0
    %352 = vmatpush.msra.mxu0 0.0
    %353 = vmatpush.msra.mxu0 %v198
    %354 = vmatpush.msra.mxu0 %v144
    %355 = vmatpush.msra.mxu0 %v136
    %356 = vmatmul.f32.gmra.mxu0 %v173
    %v357 = vpop.f32.mrf.mxu0
    %v358 = vadd.f32 %v162, %v357
    %359 = vdwg.mxu0
    %v360 = vmax.f32 %v218, 0.0
    %v361 = vmax.f32 %v238, 0.0
    %v362 = vmax.f32 %v258, 0.0
    %v363 = vmax.f32 %v278, 0.0
    %v364 = vmax.f32 %v298, 0.0
    %v365 = vmax.f32 %v318, 0.0
    %v366 = vmax.f32 %v338, 0.0
    %v367 = vmax.f32 %v358, 0.0
    %368 = vst [vmem:[#allocation2] sm:$0xf] 0.0
    %v371 = vrot.slane %v361, 7
    %vm372 = vcmask 1040384
    %v373 = vsel %vm372, %v360, %v371
    %v375 = vlaneseq
    %vm376 = vcmp.ge.s32.totalorder %v375, 0
    %vm377 = vcmp.lt.s32.totalorder %v375, 256
    %vm378 = vmand %vm376, %vm377
    %s379 = scalar_lea.vmem [#allocation2], 4
    %380 = vst.msk [vmem:[%s379] ss:$4 sm:$0x3] %vm378, %v373
    %v383 = vrot.slane %v363, 7
    %v384 = vsel %vm372, %v362, %v383
    %s386 = scalar_lea.vmem [#allocation2], 5
    %387 = vst.msk [vmem:[%s386] ss:$4 sm:$0x3] %vm378, %v384
    %v390 = vrot.slane %v365, 7
    %v391 = vsel %vm372, %v364, %v390
    %s393 = scalar_lea.vmem [#allocation2], 6
    %394 = vst.msk [vmem:[%s393] ss:$4 sm:$0x3] %vm378, %v391
    %v397 = vrot.slane %v367, 7
    %v398 = vsel %vm372, %v366, %v397
    %s400 = scalar_lea.vmem [#allocation2], 7
    %401 = vst.msk [vmem:[%s400] ss:$4 sm:$0x3] %vm378, %v398
    %v402 = vld [vmem:[#allocation2] sm:$0xff]
    %v403 = vld [vmem:[#allocation2 + $0x8] sm:$0xf]
    %406 = vst [vmem:[#allocation1] ss:$2 sm:$0xff] %v402
    %s407 = scalar_lea.vmem [#allocation1], 16
    %408 = vst [vmem:[%s407] ss:$2 sm:$0xff] %v403
    %v409 = vld.sshfl [vmem:[#allocation1] sm:$0xff pattern:$0x75316420]
    %v410 = vld.sshfl [vmem:[#allocation1 + $0x8] sm:$0xff pattern:$0x75316420]
    %v411 = vld.sshfl [vmem:[#allocation1 + $0x10] sm:$0xff pattern:$0x75316420]
    %412 = vrot.lane.b32.xlu0 %v409, 10
    %v413 = vpop.permute.xlu0 %412
    %414 = vrot.lane.b32.xlu0 %v410, 10
    %v415 = vpop.permute.xlu0 %414
    %416 = vrot.lane.b32.xlu0 %v411, 10
    %v417 = vpop.permute.xlu0 %416
    %vm418 = vcmask 80896
    %v419 = vsel %vm418, %v413, %v415
    %v420 = vsel %vm418, %v415, %v417
    %423 = vst [vmem:[#allocation3] sm:$0xf] %v419
    %424 = vst [vmem:[#allocation3 + $0x8] sm:$0xf] %v420
    %s425 = scalar_lea.vmem [#allocation1], 1
    %426 = vst [vmem:[%s425] ss:$2 sm:$0xff] %v402
    %s427 = scalar_lea.vmem [#allocation1], 17
    %428 = vst [vmem:[%s427] ss:$2 sm:$0xff] %v403
    %v429 = vld.sshfl [vmem:[#allocation1] sm:$0xff pattern:$0x75316420]
    %v430 = vld.sshfl [vmem:[#allocation1 + $0x8] sm:$0xff pattern:$0x75316420]
    %v431 = vld.sshfl [vmem:[#allocation1 + $0x10] sm:$0xff pattern:$0x75316420]
    %432 = vrot.lane.b32.xlu0 %v429, 9
    %v433 = vpop.permute.xlu0 %432
    %434 = vrot.lane.b32.xlu0 %v430, 9
    %v435 = vpop.permute.xlu0 %434
    %436 = vrot.lane.b32.xlu0 %v431, 9
    %v437 = vpop.permute.xlu0 %436
    %vm438 = vcmask 72704
    %v439 = vsel %vm438, %v433, %v435
    %v440 = vsel %vm438, %v435, %v437
    %443 = vst [vmem:[#allocation3] sm:$0xf0] %v439
    %444 = vst [vmem:[#allocation3 + $0x8] sm:$0xf0] %v440
    %445 = vst [vmem:[#allocation1] ss:$2 sm:$0xff] %v402
    %s446 = scalar_lea.vmem [#allocation1], 16
    %447 = vst [vmem:[%s446] ss:$2 sm:$0xff] %v403
    %v448 = vld.sshfl [vmem:[#allocation1] sm:$0xff pattern:$0x75316420]
    %v449 = vld.sshfl [vmem:[#allocation1 + $0x8] sm:$0xff pattern:$0x75316420]
    %v450 = vld.sshfl [vmem:[#allocation1 + $0x10] sm:$0xff pattern:$0x75316420]
    %451 = vrot.lane.b32.xlu0 %v448, 8
    %v452 = vpop.permute.xlu0 %451
    %453 = vrot.lane.b32.xlu0 %v449, 8
    %v454 = vpop.permute.xlu0 %453
    %455 = vrot.lane.b32.xlu0 %v450, 8
    %v456 = vpop.permute.xlu0 %455
    %vm457 = vcmask 64512
    %v458 = vsel %vm457, %v452, %v454
    %v459 = vsel %vm457, %v454, %v456
    %462 = vst [vmem:[#allocation3 + $0x10] sm:$0xf] %v458
    %463 = vst [vmem:[#allocation3 + $0x18] sm:$0xf] %v459
    %s464 = scalar_lea.vmem [#allocation1], 1
    %465 = vst [vmem:[%s464] ss:$2 sm:$0xff] %v402
    %s466 = scalar_lea.vmem [#allocation1], 17
    %467 = vst [vmem:[%s466] ss:$2 sm:$0xff] %v403
    %v468 = vld.sshfl [vmem:[#allocation1] sm:$0xff pattern:$0x75316420]
    %v469 = vld.sshfl [vmem:[#allocation1 + $0x8] sm:$0xff pattern:$0x75316420]
    %v470 = vld.sshfl [vmem:[#allocation1 + $0x10] sm:$0xff pattern:$0x75316420]
    %471 = vrot.lane.b32.xlu0 %v468, 7
    %v472 = vpop.permute.xlu0 %471
    %473 = vrot.lane.b32.xlu0 %v469, 7
    %v474 = vpop.permute.xlu0 %473
    %475 = vrot.lane.b32.xlu0 %v470, 7
    %v476 = vpop.permute.xlu0 %475
    %vm477 = vcmask 56320
    %v478 = vsel %vm477, %v472, %v474
    %v479 = vsel %vm477, %v474, %v476
    %482 = vst [vmem:[#allocation3 + $0x10] sm:$0xf0] %v478
    %483 = vst [vmem:[#allocation3 + $0x18] sm:$0xf0] %v479
    %484 = vst [vmem:[#allocation1] ss:$2 sm:$0xff] %v402
    %s485 = scalar_lea.vmem [#allocation1], 16
    %486 = vst [vmem:[%s485] ss:$2 sm:$0xff] %v403
    %v487 = vld.sshfl [vmem:[#allocation1] sm:$0xff pattern:$0x75316420]
    %v488 = vld.sshfl [vmem:[#allocation1 + $0x8] sm:$0xff pattern:$0x75316420]
    %v489 = vld.sshfl [vmem:[#allocation1 + $0x10] sm:$0xff pattern:$0x75316420]
    %490 = vrot.lane.b32.xlu0 %v487, 6
    %v491 = vpop.permute.xlu0 %490
    %492 = vrot.lane.b32.xlu0 %v488, 6
    %v493 = vpop.permute.xlu0 %492
    %494 = vrot.lane.b32.xlu0 %v489, 6
    %v495 = vpop.permute.xlu0 %494
    %vm496 = vcmask 48128
    %v497 = vsel %vm496, %v491, %v493
    %v498 = vsel %vm496, %v493, %v495
    %501 = vst [vmem:[#allocation3 + $0x20] sm:$0xf] %v497
    %502 = vst [vmem:[#allocation3 + $0x28] sm:$0xf] %v498
    %s503 = scalar_lea.vmem [#allocation1], 1
    %504 = vst [vmem:[%s503] ss:$2 sm:$0xff] %v402
    %s505 = scalar_lea.vmem [#allocation1], 17
    %506 = vst [vmem:[%s505] ss:$2 sm:$0xff] %v403
    %v507 = vld.sshfl [vmem:[#allocation1] sm:$0xff pattern:$0x75316420]
    %v508 = vld.sshfl [vmem:[#allocation1 + $0x8] sm:$0xff pattern:$0x75316420]
    %v509 = vld.sshfl [vmem:[#allocation1 + $0x10] sm:$0xff pattern:$0x75316420]
    %510 = vrot.lane.b32.xlu0 %v507, 5
    %v511 = vpop.permute.xlu0 %510
    %512 = vrot.lane.b32.xlu0 %v508, 5
    %v513 = vpop.permute.xlu0 %512
    %514 = vrot.lane.b32.xlu0 %v509, 5
    %v515 = vpop.permute.xlu0 %514
    %vm516 = vcmask 39936
    %v517 = vsel %vm516, %v511, %v513
    %v518 = vsel %vm516, %v513, %v515
    %521 = vst [vmem:[#allocation3 + $0x20] sm:$0xf0] %v517
    %522 = vst [vmem:[#allocation3 + $0x28] sm:$0xf0] %v518
    %523 = vst [vmem:[#allocation1] ss:$2 sm:$0xff] %v402
    %s524 = scalar_lea.vmem [#allocation1], 16
    %525 = vst [vmem:[%s524] ss:$2 sm:$0xff] %v403
    %v526 = vld.sshfl [vmem:[#allocation1] sm:$0xff pattern:$0x75316420]
    %v527 = vld.sshfl [vmem:[#allocation1 + $0x8] sm:$0xff pattern:$0x75316420]
    %v528 = vld.sshfl [vmem:[#allocation1 + $0x10] sm:$0xff pattern:$0x75316420]
    %529 = vrot.lane.b32.xlu0 %v526, 4
    %v530 = vpop.permute.xlu0 %529
    %531 = vrot.lane.b32.xlu0 %v527, 4
    %v532 = vpop.permute.xlu0 %531
    %533 = vrot.lane.b32.xlu0 %v528, 4
    %v534 = vpop.permute.xlu0 %533
    %vm535 = vcmask 31744
    %v536 = vsel %vm535, %v530, %v532
    %v537 = vsel %vm535, %v532, %v534
    %540 = vst [vmem:[#allocation3 + $0x30] sm:$0xf] %v536
    %541 = vst [vmem:[#allocation3 + $0x38] sm:$0xf] %v537
    %s542 = scalar_lea.vmem [#allocation1], 1
    %543 = vst [vmem:[%s542] ss:$2 sm:$0xff] %v402
    %s544 = scalar_lea.vmem [#allocation1], 17
    %545 = vst [vmem:[%s544] ss:$2 sm:$0xff] %v403
    %v546 = vld.sshfl [vmem:[#allocation1] sm:$0xff pattern:$0x75316420]
    %v547 = vld.sshfl [vmem:[#allocation1 + $0x8] sm:$0xff pattern:$0x75316420]
    %v548 = vld.sshfl [vmem:[#allocation1 + $0x10] sm:$0xff pattern:$0x75316420]
    %549 = vrot.lane.b32.xlu0 %v546, 3
    %v550 = vpop.permute.xlu0 %549
    %551 = vrot.lane.b32.xlu0 %v547, 3
    %v552 = vpop.permute.xlu0 %551
    %553 = vrot.lane.b32.xlu0 %v548, 3
    %v554 = vpop.permute.xlu0 %553
    %vm555 = vcmask 23552
    %v556 = vsel %vm555, %v550, %v552
    %v557 = vsel %vm555, %v552, %v554
    %560 = vst [vmem:[#allocation3 + $0x30] sm:$0xf0] %v556
    %561 = vst [vmem:[#allocation3 + $0x38] sm:$0xf0] %v557
    %562 = vst [vmem:[#allocation1] ss:$2 sm:$0xff] %v402
    %s563 = scalar_lea.vmem [#allocation1], 16
    %564 = vst [vmem:[%s563] ss:$2 sm:$0xff] %v403
    %v565 = vld.sshfl [vmem:[#allocation1] sm:$0xff pattern:$0x75316420]
    %v566 = vld.sshfl [vmem:[#allocation1 + $0x8] sm:$0xff pattern:$0x75316420]
    %v567 = vld.sshfl [vmem:[#allocation1 + $0x10] sm:$0xff pattern:$0x75316420]
    %568 = vrot.lane.b32.xlu0 %v565, 2
    %v569 = vpop.permute.xlu0 %568
    %570 = vrot.lane.b32.xlu0 %v566, 2
    %v571 = vpop.permute.xlu0 %570
    %572 = vrot.lane.b32.xlu0 %v567, 2
    %v573 = vpop.permute.xlu0 %572
    %vm574 = vcmask 15360
    %v575 = vsel %vm574, %v569, %v571
    %v576 = vsel %vm574, %v571, %v573
    %579 = vst [vmem:[#allocation3 + $0x40] sm:$0xf] %v575
    %580 = vst [vmem:[#allocation3 + $0x48] sm:$0xf] %v576
    %s581 = scalar_lea.vmem [#allocation1], 1
    %582 = vst [vmem:[%s581] ss:$2 sm:$0xff] %v402
    %s583 = scalar_lea.vmem [#allocation1], 17
    %584 = vst [vmem:[%s583] ss:$2 sm:$0xff] %v403
    %v585 = vld.sshfl [vmem:[#allocation1] sm:$0xff pattern:$0x75316420]
    %v586 = vld.sshfl [vmem:[#allocation1 + $0x8] sm:$0xff pattern:$0x75316420]
    %v587 = vld.sshfl [vmem:[#allocation1 + $0x10] sm:$0xff pattern:$0x75316420]
    %588 = vrot.lane.b32.xlu0 %v585, 1
    %v589 = vpop.permute.xlu0 %588
    %590 = vrot.lane.b32.xlu0 %v586, 1
    %v591 = vpop.permute.xlu0 %590
    %592 = vrot.lane.b32.xlu0 %v587, 1
    %v593 = vpop.permute.xlu0 %592
    %vm594 = vcmask 7168
    %v595 = vsel %vm594, %v589, %v591
    %v596 = vsel %vm594, %v591, %v593
    %599 = vst [vmem:[#allocation3 + $0x40] sm:$0xf0] %v595
    %600 = vst [vmem:[#allocation3 + $0x48] sm:$0xf0] %v596
    %601 = vst [vmem:[#allocation1] ss:$2 sm:$0xff] %v402
    %s602 = scalar_lea.vmem [#allocation1], 16
    %603 = vst [vmem:[%s602] ss:$2 sm:$0xff] %v403
    %v604 = vld.sshfl [vmem:[#allocation1 + $0x8] sm:$0xff pattern:$0x75316420]
    %v605 = vld.sshfl [vmem:[#allocation1 + $0x10] sm:$0xff pattern:$0x75316420]
    %608 = vst [vmem:[#allocation3 + $0x50] sm:$0xf] %v604
    %609 = vst [vmem:[#allocation3 + $0x58] sm:$0xf] %v605
    %v610 = vld [vmem:[#allocation12] sm:$0xff]
    %v611 = vld [vmem:[#allocation12 + $0x8] sm:$0xff]
    %v612 = vld [vmem:[#allocation3] sm:$0xff]
    %v613 = vld [vmem:[#allocation3 + $0x8] sm:$0xff]
    %v614 = vld [vmem:[#allocation3 + $0x10] sm:$0xff]
    %v615 = vld [vmem:[#allocation3 + $0x18] sm:$0xff]
    %v616 = vld [vmem:[#allocation3 + $0x20] sm:$0xff]
    %v617 = vld [vmem:[#allocation3 + $0x28] sm:$0xff]
    %v618 = vld [vmem:[#allocation3 + $0x30] sm:$0xff]
    %v619 = vld [vmem:[#allocation3 + $0x38] sm:$0xff]
    %v620 = vld [vmem:[#allocation3 + $0x40] sm:$0xff]
    %v621 = vld [vmem:[#allocation3 + $0x48] sm:$0xff]
    %v622 = vld [vmem:[#allocation3 + $0x50] sm:$0xf]
    %v623 = vld [vmem:[#allocation3 + $0x58] sm:$0xf]
    %v624 = vld [vmem:[#allocation14] sm:$0xff]
    %v625 = vld [vmem:[#allocation14 + $0x8] sm:$0xff]
    %v626 = vld [vmem:[#allocation14 + $0x10] sm:$0xff]
    %v627 = vld [vmem:[#allocation14 + $0x18] sm:$0xff]
    %vm628 = vcmask 359424
    %v630 = vsel %vm628, %v610, 0
    %v633 = vsel %vm628, %v611, 0
    %v636 = vsel %vm175, %v622, 0
    %v639 = vsel %vm175, %v623, 0
    %641 = vmatpush.msra.mxu0 0.0
    %642 = vmatpush.msra.mxu0 0.0
    %643 = vmatpush.msra.mxu0 0.0
    %644 = vmatpush.msra.mxu0 0.0
    %645 = vmatpush.msra.mxu0 0.0
    %646 = vmatpush.msra.mxu0 0.0
    %647 = vmatpush.msra.mxu0 0.0
    %648 = vmatpush.msra.mxu0 0.0
    %649 = vmatpush.msra.mxu0 0.0
    %650 = vmatpush.msra.mxu0 0.0
    %651 = vmatpush.msra.mxu0 %v636
    %652 = vmatpush.msra.mxu0 %v620
    %653 = vmatpush.msra.mxu0 %v618
    %654 = vmatpush.msra.mxu0 %v616
    %655 = vmatpush.msra.mxu0 %v614
    %656 = vmatpush.msra.mxu0 %v612
    %657 = vmatmul.f32.gmra.mxu0 %v630
    %v658 = vpop.f32.mrf.mxu0
    %v659 = vadd.f32 %v624, %v658
    %660 = vmatmul.f32.gmra.mxu0 %v633
    %v661 = vpop.f32.mrf.mxu0
    %v662 = vadd.f32 %v626, %v661
    %663 = vdwg.mxu0
    %664 = vmatpush.msra.mxu0 0.0
    %665 = vmatpush.msra.mxu0 0.0
    %666 = vmatpush.msra.mxu0 0.0
    %667 = vmatpush.msra.mxu0 0.0
    %668 = vmatpush.msra.mxu0 0.0
    %669 = vmatpush.msra.mxu0 0.0
    %670 = vmatpush.msra.mxu0 0.0
    %671 = vmatpush.msra.mxu0 0.0
    %672 = vmatpush.msra.mxu0 0.0
    %673 = vmatpush.msra.mxu0 0.0
    %674 = vmatpush.msra.mxu0 %v639
    %675 = vmatpush.msra.mxu0 %v621
    %676 = vmatpush.msra.mxu0 %v619
    %677 = vmatpush.msra.mxu0 %v617
    %678 = vmatpush.msra.mxu0 %v615
    %679 = vmatpush.msra.mxu0 %v613
    %680 = vmatmul.f32.gmra.mxu0 %v630
    %v681 = vpop.f32.mrf.mxu0
    %v682 = vadd.f32 %v625, %v681
    %683 = vmatmul.f32.gmra.mxu0 %v633
    %v684 = vpop.f32.mrf.mxu0
    %v685 = vadd.f32 %v627, %v684
    %686 = vdwg.mxu0
    %v687 = vmax.f32 %v659, 0.0
    %v688 = vmax.f32 %v682, 0.0
    %v689 = vmax.f32 %v662, 0.0
    %v690 = vmax.f32 %v685, 0.0
    %v691 = vlaneseq
    %v692 = vand.u32 %v691, 127
    %v693 = vadd.s32 %v692, 128
    %vm694 = vcmp.lt.s32.totalorder %v692, 170
    %vm695 = vcmp.lt.s32.totalorder %v693, 170
    %v696 = vsel %vm694, %v687, 0.0
    %v697 = vsel %vm695, %v688, 0.0
    %v698 = vsel %vm694, %v689, 0.0
    %v699 = vsel %vm695, %v690, 0.0
    %700 = vst [vmem:[#allocation4] sm:$0xff] 0.0
    %701 = vst [vmem:[#allocation4 + $0x18] sm:$0xff] 0.0
    %702 = vst [vmem:[#allocation4 + $0x8] sm:$0xff] %v696
    %703 = vst [vmem:[#allocation4 + $0x10] sm:$0xff] %v697
    %704 = vst [vmem:[#allocation4 + $0x20] sm:$0xff] %v698
    %705 = vst [vmem:[#allocation4 + $0x28] sm:$0xff] %v699
    %v706 = vld [vmem:[#allocation4] sm:$0xff]
    %v707 = vld [vmem:[#allocation4 + $0x8] sm:$0xff]
    %v708 = vld [vmem:[#allocation4 + $0x10] sm:$0xff]
    %v709 = vld [vmem:[#allocation4 + $0x18] sm:$0xff]
    %v710 = vld [vmem:[#allocation4 + $0x20] sm:$0xff]
    %v711 = vld [vmem:[#allocation4 + $0x28] sm:$0xff]
    %718 = vrot.lane.b32.xlu0 %v706, 30
    %v719 = vpop.permute.xlu0 %718
    %720 = vrot.lane.b32.xlu0 %v707, 30
    %v721 = vpop.permute.xlu0 %720
    %722 = vrot.lane.b32.xlu0 %v708, 30
    %v723 = vpop.permute.xlu0 %722
    %724 = vrot.lane.b32.xlu0 %v709, 30
    %v725 = vpop.permute.xlu0 %724
    %726 = vrot.lane.b32.xlu0 %v710, 30
    %v727 = vpop.permute.xlu0 %726
    %728 = vrot.lane.b32.xlu0 %v711, 30
    %v729 = vpop.permute.xlu0 %728
    %vm730 = vcmask 244736
    %v731 = vsel %vm730, %v719, %v721
    %v732 = vsel %vm730, %v721, %v723
    %v733 = vsel %vm730, %v725, %v727
    %v734 = vsel %vm730, %v727, %v729
    %739 = vst [vmem:[#allocation5] sm:$0xff] %v731
    %740 = vst [vmem:[#allocation5 + $0x8] sm:$0xff] %v732
    %741 = vst [vmem:[#allocation5 + $0x10] sm:$0xff] %v733
    %742 = vst [vmem:[#allocation5 + $0x18] sm:$0xff] %v734
    %743 = vrot.lane.b32.xlu0 %v706, 29
    %v744 = vpop.permute.xlu0 %743
    %745 = vrot.lane.b32.xlu0 %v707, 29
    %v746 = vpop.permute.xlu0 %745
    %747 = vrot.lane.b32.xlu0 %v708, 29
    %v748 = vpop.permute.xlu0 %747
    %749 = vrot.lane.b32.xlu0 %v709, 29
    %v750 = vpop.permute.xlu0 %749
    %751 = vrot.lane.b32.xlu0 %v710, 29
    %v752 = vpop.permute.xlu0 %751
    %753 = vrot.lane.b32.xlu0 %v711, 29
    %v754 = vpop.permute.xlu0 %753
    %vm755 = vcmask 236544
    %v756 = vsel %vm755, %v744, %v746
    %v757 = vsel %vm755, %v746, %v748
    %v758 = vsel %vm755, %v750, %v752
    %v759 = vsel %vm755, %v752, %v754
    %764 = vst [vmem:[#allocation5 + $0x20] sm:$0xff] %v756
    %765 = vst [vmem:[#allocation5 + $0x28] sm:$0xff] %v757
    %766 = vst [vmem:[#allocation5 + $0x30] sm:$0xff] %v758
    %767 = vst [vmem:[#allocation5 + $0x38] sm:$0xff] %v759
    %768 = vrot.lane.b32.xlu0 %v706, 28
    %v769 = vpop.permute.xlu0 %768
    %770 = vrot.lane.b32.xlu0 %v707, 28
    %v771 = vpop.permute.xlu0 %770
    %772 = vrot.lane.b32.xlu0 %v708, 28
    %v773 = vpop.permute.xlu0 %772
    %774 = vrot.lane.b32.xlu0 %v709, 28
    %v775 = vpop.permute.xlu0 %774
    %776 = vrot.lane.b32.xlu0 %v710, 28
    %v777 = vpop.permute.xlu0 %776
    %778 = vrot.lane.b32.xlu0 %v711, 28
    %v779 = vpop.permute.xlu0 %778
    %vm780 = vcmask 228352
    %v781 = vsel %vm780, %v769, %v771
    %v782 = vsel %vm780, %v771, %v773
    %v783 = vsel %vm780, %v775, %v777
    %v784 = vsel %vm780, %v777, %v779
    %789 = vst [vmem:[#allocation5 + $0x40] sm:$0xff] %v781
    %790 = vst [vmem:[#allocation5 + $0x48] sm:$0xff] %v782
    %791 = vst [vmem:[#allocation5 + $0x50] sm:$0xff] %v783
    %792 = vst [vmem:[#allocation5 + $0x58] sm:$0xff] %v784
    %793 = vrot.lane.b32.xlu0 %v706, 27
    %v794 = vpop.permute.xlu0 %793
    %795 = vrot.lane.b32.xlu0 %v707, 27
    %v796 = vpop.permute.xlu0 %795
    %797 = vrot.lane.b32.xlu0 %v708, 27
    %v798 = vpop.permute.xlu0 %797
    %799 = vrot.lane.b32.xlu0 %v709, 27
    %v800 = vpop.permute.xlu0 %799
    %801 = vrot.lane.b32.xlu0 %v710, 27
    %v802 = vpop.permute.xlu0 %801
    %803 = vrot.lane.b32.xlu0 %v711, 27
    %v804 = vpop.permute.xlu0 %803
    %vm805 = vcmask 220160
    %v806 = vsel %vm805, %v794, %v796
    %v807 = vsel %vm805, %v796, %v798
    %v808 = vsel %vm805, %v800, %v802
    %v809 = vsel %vm805, %v802, %v804
    %814 = vst [vmem:[#allocation5 + $0x60] sm:$0xff] %v806
    %815 = vst [vmem:[#allocation5 + $0x68] sm:$0xff] %v807
    %816 = vst [vmem:[#allocation5 + $0x70] sm:$0xff] %v808
    %817 = vst [vmem:[#allocation5 + $0x78] sm:$0xff] %v809
    %818 = vrot.lane.b32.xlu0 %v706, 26
    %v819 = vpop.permute.xlu0 %818
    %820 = vrot.lane.b32.xlu0 %v707, 26
    %v821 = vpop.permute.xlu0 %820
    %822 = vrot.lane.b32.xlu0 %v708, 26
    %v823 = vpop.permute.xlu0 %822
    %824 = vrot.lane.b32.xlu0 %v709, 26
    %v825 = vpop.permute.xlu0 %824
    %826 = vrot.lane.b32.xlu0 %v710, 26
    %v827 = vpop.permute.xlu0 %826
    %828 = vrot.lane.b32.xlu0 %v711, 26
    %v829 = vpop.permute.xlu0 %828
    %vm830 = vcmask 211968
    %v831 = vsel %vm830, %v819, %v821
    %v832 = vsel %vm830, %v821, %v823
    %v833 = vsel %vm830, %v825, %v827
    %v834 = vsel %vm830, %v827, %v829
    %839 = vst [vmem:[#allocation5 + $0x80] sm:$0xff] %v831
    %840 = vst [vmem:[#allocation5 + $0x88] sm:$0xff] %v832
    %841 = vst [vmem:[#allocation5 + $0x90] sm:$0xff] %v833
    %842 = vst [vmem:[#allocation5 + $0x98] sm:$0xff] %v834
    %843 = vrot.lane.b32.xlu0 %v706, 25
    %v844 = vpop.permute.xlu0 %843
    %845 = vrot.lane.b32.xlu0 %v707, 25
    %v846 = vpop.permute.xlu0 %845
    %847 = vrot.lane.b32.xlu0 %v708, 25
    %v848 = vpop.permute.xlu0 %847
    %849 = vrot.lane.b32.xlu0 %v709, 25
    %v850 = vpop.permute.xlu0 %849
    %851 = vrot.lane.b32.xlu0 %v710, 25
    %v852 = vpop.permute.xlu0 %851
    %853 = vrot.lane.b32.xlu0 %v711, 25
    %v854 = vpop.permute.xlu0 %853
    %vm855 = vcmask 203776
    %v856 = vsel %vm855, %v844, %v846
    %v857 = vsel %vm855, %v846, %v848
    %v858 = vsel %vm855, %v850, %v852
    %v859 = vsel %vm855, %v852, %v854
    %864 = vst [vmem:[#allocation5 + $0xa0] sm:$0xff] %v856
    %865 = vst [vmem:[#allocation5 + $0xa8] sm:$0xff] %v857
    %866 = vst [vmem:[#allocation5 + $0xb0] sm:$0xff] %v858
    %867 = vst [vmem:[#allocation5 + $0xb8] sm:$0xff] %v859
    %868 = vrot.lane.b32.xlu0 %v706, 24
    %v869 = vpop.permute.xlu0 %868
    %870 = vrot.lane.b32.xlu0 %v707, 24
    %v871 = vpop.permute.xlu0 %870
    %872 = vrot.lane.b32.xlu0 %v708, 24
    %v873 = vpop.permute.xlu0 %872
    %874 = vrot.lane.b32.xlu0 %v709, 24
    %v875 = vpop.permute.xlu0 %874
    %876 = vrot.lane.b32.xlu0 %v710, 24
    %v877 = vpop.permute.xlu0 %876
    %878 = vrot.lane.b32.xlu0 %v711, 24
    %v879 = vpop.permute.xlu0 %878
    %vm880 = vcmask 195584
    %v881 = vsel %vm880, %v869, %v871
    %v882 = vsel %vm880, %v871, %v873
    %v883 = vsel %vm880, %v875, %v877
    %v884 = vsel %vm880, %v877, %v879
    %889 = vst [vmem:[#allocation5 + $0xc0] sm:$0xff] %v881
    %890 = vst [vmem:[#allocation5 + $0xc8] sm:$0xff] %v882
    %891 = vst [vmem:[#allocation5 + $0xd0] sm:$0xff] %v883
    %892 = vst [vmem:[#allocation5 + $0xd8] sm:$0xff] %v884
    %893 = vrot.lane.b32.xlu0 %v706, 23
    %v894 = vpop.permute.xlu0 %893
    %895 = vrot.lane.b32.xlu0 %v707, 23
    %v896 = vpop.permute.xlu0 %895
    %897 = vrot.lane.b32.xlu0 %v708, 23
    %v898 = vpop.permute.xlu0 %897
    %899 = vrot.lane.b32.xlu0 %v709, 23
    %v900 = vpop.permute.xlu0 %899
    %901 = vrot.lane.b32.xlu0 %v710, 23
    %v902 = vpop.permute.xlu0 %901
    %903 = vrot.lane.b32.xlu0 %v711, 23
    %v904 = vpop.permute.xlu0 %903
    %vm905 = vcmask 187392
    %v906 = vsel %vm905, %v894, %v896
    %v907 = vsel %vm905, %v896, %v898
    %v908 = vsel %vm905, %v900, %v902
    %v909 = vsel %vm905, %v902, %v904
    %914 = vst [vmem:[#allocation5 + $0xe0] sm:$0xff] %v906
    %915 = vst [vmem:[#allocation5 + $0xe8] sm:$0xff] %v907
    %916 = vst [vmem:[#allocation5 + $0xf0] sm:$0xff] %v908
    %917 = vst [vmem:[#allocation5 + $0xf8] sm:$0xff] %v909
    %918 = vrot.lane.b32.xlu0 %v706, 22
    %v919 = vpop.permute.xlu0 %918
    %920 = vrot.lane.b32.xlu0 %v707, 22
    %v921 = vpop.permute.xlu0 %920
    %922 = vrot.lane.b32.xlu0 %v708, 22
    %v923 = vpop.permute.xlu0 %922
    %924 = vrot.lane.b32.xlu0 %v709, 22
    %v925 = vpop.permute.xlu0 %924
    %926 = vrot.lane.b32.xlu0 %v710, 22
    %v927 = vpop.permute.xlu0 %926
    %928 = vrot.lane.b32.xlu0 %v711, 22
    %v929 = vpop.permute.xlu0 %928
    %vm930 = vcmask 179200
    %v931 = vsel %vm930, %v919, %v921
    %v932 = vsel %vm930, %v921, %v923
    %v933 = vsel %vm930, %v925, %v927
    %v934 = vsel %vm930, %v927, %v929
    %939 = vst [vmem:[#allocation5 + $0x100] sm:$0xff] %v931
    %940 = vst [vmem:[#allocation5 + $0x108] sm:$0xff] %v932
    %941 = vst [vmem:[#allocation5 + $0x110] sm:$0xff] %v933
    %942 = vst [vmem:[#allocation5 + $0x118] sm:$0xff] %v934
    %943 = vrot.lane.b32.xlu0 %v706, 21
    %v944 = vpop.permute.xlu0 %943
    %945 = vrot.lane.b32.xlu0 %v707, 21
    %v946 = vpop.permute.xlu0 %945
    %947 = vrot.lane.b32.xlu0 %v708, 21
    %v948 = vpop.permute.xlu0 %947
    %949 = vrot.lane.b32.xlu0 %v709, 21
    %v950 = vpop.permute.xlu0 %949
    %951 = vrot.lane.b32.xlu0 %v710, 21
    %v952 = vpop.permute.xlu0 %951
    %953 = vrot.lane.b32.xlu0 %v711, 21
    %v954 = vpop.permute.xlu0 %953
    %vm955 = vcmask 171008
    %v956 = vsel %vm955, %v944, %v946
    %v957 = vsel %vm955, %v946, %v948
    %v958 = vsel %vm955, %v950, %v952
    %v959 = vsel %vm955, %v952, %v954
    %964 = vst [vmem:[#allocation5 + $0x120] sm:$0xff] %v956
    %965 = vst [vmem:[#allocation5 + $0x128] sm:$0xff] %v957
    %966 = vst [vmem:[#allocation5 + $0x130] sm:$0xff] %v958
    %967 = vst [vmem:[#allocation5 + $0x138] sm:$0xff] %v959
    %968 = vrot.lane.b32.xlu0 %v706, 20
    %v969 = vpop.permute.xlu0 %968
    %970 = vrot.lane.b32.xlu0 %v707, 20
    %v971 = vpop.permute.xlu0 %970
    %972 = vrot.lane.b32.xlu0 %v708, 20
    %v973 = vpop.permute.xlu0 %972
    %974 = vrot.lane.b32.xlu0 %v709, 20
    %v975 = vpop.permute.xlu0 %974
    %976 = vrot.lane.b32.xlu0 %v710, 20
    %v977 = vpop.permute.xlu0 %976
    %978 = vrot.lane.b32.xlu0 %v711, 20
    %v979 = vpop.permute.xlu0 %978
    %v980 = vsel %vm171, %v969, %v971
    %v981 = vsel %vm171, %v971, %v973
    %v982 = vsel %vm171, %v975, %v977
    %v983 = vsel %vm171, %v977, %v979
    %988 = vst [vmem:[#allocation5 + $0x140] sm:$0xff] %v980
    %989 = vst [vmem:[#allocation5 + $0x148] sm:$0xff] %v981
    %990 = vst [vmem:[#allocation5 + $0x150] sm:$0xff] %v982
    %991 = vst [vmem:[#allocation5 + $0x158] sm:$0xff] %v983
    %992 = vrot.lane.b32.xlu0 %v706, 19
    %v993 = vpop.permute.xlu0 %992
    %994 = vrot.lane.b32.xlu0 %v707, 19
    %v995 = vpop.permute.xlu0 %994
    %996 = vrot.lane.b32.xlu0 %v708, 19
    %v997 = vpop.permute.xlu0 %996
    %998 = vrot.lane.b32.xlu0 %v709, 19
    %v999 = vpop.permute.xlu0 %998
    %1000 = vrot.lane.b32.xlu0 %v710, 19
    %v1001 = vpop.permute.xlu0 %1000
    %1002 = vrot.lane.b32.xlu0 %v711, 19
    %v1003 = vpop.permute.xlu0 %1002
    %vm1004 = vcmask 154624
    %v1005 = vsel %vm1004, %v993, %v995
    %v1006 = vsel %vm1004, %v995, %v997
    %v1007 = vsel %vm1004, %v999, %v1001
    %v1008 = vsel %vm1004, %v1001, %v1003
    %1013 = vst [vmem:[#allocation5 + $0x160] sm:$0xff] %v1005
    %1014 = vst [vmem:[#allocation5 + $0x168] sm:$0xff] %v1006
    %1015 = vst [vmem:[#allocation5 + $0x170] sm:$0xff] %v1007
    %1016 = vst [vmem:[#allocation5 + $0x178] sm:$0xff] %v1008
    %1017 = vrot.lane.b32.xlu0 %v706, 18
    %v1018 = vpop.permute.xlu0 %1017
    %1019 = vrot.lane.b32.xlu0 %v707, 18
    %v1020 = vpop.permute.xlu0 %1019
    %1021 = vrot.lane.b32.xlu0 %v708, 18
    %v1022 = vpop.permute.xlu0 %1021
    %1023 = vrot.lane.b32.xlu0 %v709, 18
    %v1024 = vpop.permute.xlu0 %1023
    %1025 = vrot.lane.b32.xlu0 %v710, 18
    %v1026 = vpop.permute.xlu0 %1025
    %1027 = vrot.lane.b32.xlu0 %v711, 18
    %v1028 = vpop.permute.xlu0 %1027
    %vm1029 = vcmask 146432
    %v1030 = vsel %vm1029, %v1018, %v1020
    %v1031 = vsel %vm1029, %v1020, %v1022
    %v1032 = vsel %vm1029, %v1024, %v1026
    %v1033 = vsel %vm1029, %v1026, %v1028
    %1038 = vst [vmem:[#allocation5 + $0x180] sm:$0xff] %v1030
    %1039 = vst [vmem:[#allocation5 + $0x188] sm:$0xff] %v1031
    %1040 = vst [vmem:[#allocation5 + $0x190] sm:$0xff] %v1032
    %1041 = vst [vmem:[#allocation5 + $0x198] sm:$0xff] %v1033
    %1042 = vrot.lane.b32.xlu0 %v706, 17
    %v1043 = vpop.permute.xlu0 %1042
    %1044 = vrot.lane.b32.xlu0 %v707, 17
    %v1045 = vpop.permute.xlu0 %1044
    %1046 = vrot.lane.b32.xlu0 %v708, 17
    %v1047 = vpop.permute.xlu0 %1046
    %1048 = vrot.lane.b32.xlu0 %v709, 17
    %v1049 = vpop.permute.xlu0 %1048
    %1050 = vrot.lane.b32.xlu0 %v710, 17
    %v1051 = vpop.permute.xlu0 %1050
    %1052 = vrot.lane.b32.xlu0 %v711, 17
    %v1053 = vpop.permute.xlu0 %1052
    %vm1054 = vcmask 138240
    %v1055 = vsel %vm1054, %v1043, %v1045
    %v1056 = vsel %vm1054, %v1045, %v1047
    %v1057 = vsel %vm1054, %v1049, %v1051
    %v1058 = vsel %vm1054, %v1051, %v1053
    %1063 = vst [vmem:[#allocation5 + $0x1a0] sm:$0xff] %v1055
    %1064 = vst [vmem:[#allocation5 + $0x1a8] sm:$0xff] %v1056
    %1065 = vst [vmem:[#allocation5 + $0x1b0] sm:$0xff] %v1057
    %1066 = vst [vmem:[#allocation5 + $0x1b8] sm:$0xff] %v1058
    %1067 = vrot.lane.b32.xlu0 %v706, 16
    %v1068 = vpop.permute.xlu0 %1067
    %1069 = vrot.lane.b32.xlu0 %v707, 16
    %v1070 = vpop.permute.xlu0 %1069
    %1071 = vrot.lane.b32.xlu0 %v708, 16
    %v1072 = vpop.permute.xlu0 %1071
    %1073 = vrot.lane.b32.xlu0 %v709, 16
    %v1074 = vpop.permute.xlu0 %1073
    %1075 = vrot.lane.b32.xlu0 %v710, 16
    %v1076 = vpop.permute.xlu0 %1075
    %1077 = vrot.lane.b32.xlu0 %v711, 16
    %v1078 = vpop.permute.xlu0 %1077
    %vm1079 = vcmask 130048
    %v1080 = vsel %vm1079, %v1068, %v1070
    %v1081 = vsel %vm1079, %v1070, %v1072
    %v1082 = vsel %vm1079, %v1074, %v1076
    %v1083 = vsel %vm1079, %v1076, %v1078
    %1088 = vst [vmem:[#allocation5 + $0x1c0] sm:$0xff] %v1080
    %1089 = vst [vmem:[#allocation5 + $0x1c8] sm:$0xff] %v1081
    %1090 = vst [vmem:[#allocation5 + $0x1d0] sm:$0xff] %v1082
    %1091 = vst [vmem:[#allocation5 + $0x1d8] sm:$0xff] %v1083
    %1092 = vrot.lane.b32.xlu0 %v706, 15
    %v1093 = vpop.permute.xlu0 %1092
    %1094 = vrot.lane.b32.xlu0 %v707, 15
    %v1095 = vpop.permute.xlu0 %1094
    %1096 = vrot.lane.b32.xlu0 %v708, 15
    %v1097 = vpop.permute.xlu0 %1096
    %1098 = vrot.lane.b32.xlu0 %v709, 15
    %v1099 = vpop.permute.xlu0 %1098
    %1100 = vrot.lane.b32.xlu0 %v710, 15
    %v1101 = vpop.permute.xlu0 %1100
    %1102 = vrot.lane.b32.xlu0 %v711, 15
    %v1103 = vpop.permute.xlu0 %1102
    %vm1104 = vcmask 121856
    %v1105 = vsel %vm1104, %v1093, %v1095
    %v1106 = vsel %vm1104, %v1095, %v1097
    %v1107 = vsel %vm1104, %v1099, %v1101
    %v1108 = vsel %vm1104, %v1101, %v1103
    %1113 = vst [vmem:[#allocation5 + $0x1e0] sm:$0xff] %v1105
    %1114 = vst [vmem:[#allocation5 + $0x1e8] sm:$0xff] %v1106
    %1115 = vst [vmem:[#allocation5 + $0x1f0] sm:$0xff] %v1107
    %1116 = vst [vmem:[#allocation5 + $0x1f8] sm:$0xff] %v1108
    %1117 = vrot.lane.b32.xlu0 %v706, 14
    %v1118 = vpop.permute.xlu0 %1117
    %1119 = vrot.lane.b32.xlu0 %v707, 14
    %v1120 = vpop.permute.xlu0 %1119
    %1121 = vrot.lane.b32.xlu0 %v708, 14
    %v1122 = vpop.permute.xlu0 %1121
    %1123 = vrot.lane.b32.xlu0 %v709, 14
    %v1124 = vpop.permute.xlu0 %1123
    %1125 = vrot.lane.b32.xlu0 %v710, 14
    %v1126 = vpop.permute.xlu0 %1125
    %1127 = vrot.lane.b32.xlu0 %v711, 14
    %v1128 = vpop.permute.xlu0 %1127
    %vm1129 = vcmask 113664
    %v1130 = vsel %vm1129, %v1118, %v1120
    %v1131 = vsel %vm1129, %v1120, %v1122
    %v1132 = vsel %vm1129, %v1124, %v1126
    %v1133 = vsel %vm1129, %v1126, %v1128
    %1138 = vst [vmem:[#allocation5 + $0x200] sm:$0xff] %v1130
    %1139 = vst [vmem:[#allocation5 + $0x208] sm:$0xff] %v1131
    %1140 = vst [vmem:[#allocation5 + $0x210] sm:$0xff] %v1132
    %1141 = vst [vmem:[#allocation5 + $0x218] sm:$0xff] %v1133
    %1142 = vrot.lane.b32.xlu0 %v706, 13
    %v1143 = vpop.permute.xlu0 %1142
    %1144 = vrot.lane.b32.xlu0 %v707, 13
    %v1145 = vpop.permute.xlu0 %1144
    %1146 = vrot.lane.b32.xlu0 %v708, 13
    %v1147 = vpop.permute.xlu0 %1146
    %1148 = vrot.lane.b32.xlu0 %v709, 13
    %v1149 = vpop.permute.xlu0 %1148
    %1150 = vrot.lane.b32.xlu0 %v710, 13
    %v1151 = vpop.permute.xlu0 %1150
    %1152 = vrot.lane.b32.xlu0 %v711, 13
    %v1153 = vpop.permute.xlu0 %1152
    %vm1154 = vcmask 105472
    %v1155 = vsel %vm1154, %v1143, %v1145
    %v1156 = vsel %vm1154, %v1145, %v1147
    %v1157 = vsel %vm1154, %v1149, %v1151
    %v1158 = vsel %vm1154, %v1151, %v1153
    %1163 = vst [vmem:[#allocation5 + $0x220] sm:$0xff] %v1155
    %1164 = vst [vmem:[#allocation5 + $0x228] sm:$0xff] %v1156
    %1165 = vst [vmem:[#allocation5 + $0x230] sm:$0xff] %v1157
    %1166 = vst [vmem:[#allocation5 + $0x238] sm:$0xff] %v1158
    %1167 = vrot.lane.b32.xlu0 %v706, 12
    %v1168 = vpop.permute.xlu0 %1167
    %1169 = vrot.lane.b32.xlu0 %v707, 12
    %v1170 = vpop.permute.xlu0 %1169
    %1171 = vrot.lane.b32.xlu0 %v708, 12
    %v1172 = vpop.permute.xlu0 %1171
    %1173 = vrot.lane.b32.xlu0 %v709, 12
    %v1174 = vpop.permute.xlu0 %1173
    %1175 = vrot.lane.b32.xlu0 %v710, 12
    %v1176 = vpop.permute.xlu0 %1175
    %1177 = vrot.lane.b32.xlu0 %v711, 12
    %v1178 = vpop.permute.xlu0 %1177
    %vm1179 = vcmask 97280
    %v1180 = vsel %vm1179, %v1168, %v1170
    %v1181 = vsel %vm1179, %v1170, %v1172
    %v1182 = vsel %vm1179, %v1174, %v1176
    %v1183 = vsel %vm1179, %v1176, %v1178
    %1188 = vst [vmem:[#allocation5 + $0x240] sm:$0xff] %v1180
    %1189 = vst [vmem:[#allocation5 + $0x248] sm:$0xff] %v1181
    %1190 = vst [vmem:[#allocation5 + $0x250] sm:$0xff] %v1182
    %1191 = vst [vmem:[#allocation5 + $0x258] sm:$0xff] %v1183
    %1192 = vrot.lane.b32.xlu0 %v706, 11
    %v1193 = vpop.permute.xlu0 %1192
    %1194 = vrot.lane.b32.xlu0 %v707, 11
    %v1195 = vpop.permute.xlu0 %1194
    %1196 = vrot.lane.b32.xlu0 %v708, 11
    %v1197 = vpop.permute.xlu0 %1196
    %1198 = vrot.lane.b32.xlu0 %v709, 11
    %v1199 = vpop.permute.xlu0 %1198
    %1200 = vrot.lane.b32.xlu0 %v710, 11
    %v1201 = vpop.permute.xlu0 %1200
    %1202 = vrot.lane.b32.xlu0 %v711, 11
    %v1203 = vpop.permute.xlu0 %1202
    %vm1204 = vcmask 89088
    %v1205 = vsel %vm1204, %v1193, %v1195
    %v1206 = vsel %vm1204, %v1195, %v1197
    %v1207 = vsel %vm1204, %v1199, %v1201
    %v1208 = vsel %vm1204, %v1201, %v1203
    %1213 = vst [vmem:[#allocation5 + $0x260] sm:$0xff] %v1205
    %1214 = vst [vmem:[#allocation5 + $0x268] sm:$0xff] %v1206
    %1215 = vst [vmem:[#allocation5 + $0x270] sm:$0xff] %v1207
    %1216 = vst [vmem:[#allocation5 + $0x278] sm:$0xff] %v1208
    %1217 = vrot.lane.b32.xlu0 %v706, 10
    %v1218 = vpop.permute.xlu0 %1217
    %1219 = vrot.lane.b32.xlu0 %v707, 10
    %v1220 = vpop.permute.xlu0 %1219
    %1221 = vrot.lane.b32.xlu0 %v708, 10
    %v1222 = vpop.permute.xlu0 %1221
    %1223 = vrot.lane.b32.xlu0 %v709, 10
    %v1224 = vpop.permute.xlu0 %1223
    %1225 = vrot.lane.b32.xlu0 %v710, 10
    %v1226 = vpop.permute.xlu0 %1225
    %1227 = vrot.lane.b32.xlu0 %v711, 10
    %v1228 = vpop.permute.xlu0 %1227
    %v1229 = vsel %vm418, %v1218, %v1220
    %v1230 = vsel %vm418, %v1220, %v1222
    %v1231 = vsel %vm418, %v1224, %v1226
    %v1232 = vsel %vm418, %v1226, %v1228
    %1237 = vst [vmem:[#allocation5 + $0x280] sm:$0xff] %v1229
    %1238 = vst [vmem:[#allocation5 + $0x288] sm:$0xff] %v1230
    %1239 = vst [vmem:[#allocation5 + $0x290] sm:$0xff] %v1231
    %1240 = vst [vmem:[#allocation5 + $0x298] sm:$0xff] %v1232
    %1241 = vrot.lane.b32.xlu0 %v706, 9
    %v1242 = vpop.permute.xlu0 %1241
    %1243 = vrot.lane.b32.xlu0 %v707, 9
    %v1244 = vpop.permute.xlu0 %1243
    %1245 = vrot.lane.b32.xlu0 %v708, 9
    %v1246 = vpop.permute.xlu0 %1245
    %1247 = vrot.lane.b32.xlu0 %v709, 9
    %v1248 = vpop.permute.xlu0 %1247
    %1249 = vrot.lane.b32.xlu0 %v710, 9
    %v1250 = vpop.permute.xlu0 %1249
    %1251 = vrot.lane.b32.xlu0 %v711, 9
    %v1252 = vpop.permute.xlu0 %1251
    %v1253 = vsel %vm438, %v1242, %v1244
    %v1254 = vsel %vm438, %v1244, %v1246
    %v1255 = vsel %vm438, %v1248, %v1250
    %v1256 = vsel %vm438, %v1250, %v1252
    %1261 = vst [vmem:[#allocation5 + $0x2a0] sm:$0xff] %v1253
    %1262 = vst [vmem:[#allocation5 + $0x2a8] sm:$0xff] %v1254
    %1263 = vst [vmem:[#allocation5 + $0x2b0] sm:$0xff] %v1255
    %1264 = vst [vmem:[#allocation5 + $0x2b8] sm:$0xff] %v1256
    %1265 = vrot.lane.b32.xlu0 %v706, 8
    %v1266 = vpop.permute.xlu0 %1265
    %1267 = vrot.lane.b32.xlu0 %v707, 8
    %v1268 = vpop.permute.xlu0 %1267
    %1269 = vrot.lane.b32.xlu0 %v708, 8
    %v1270 = vpop.permute.xlu0 %1269
    %1271 = vrot.lane.b32.xlu0 %v709, 8
    %v1272 = vpop.permute.xlu0 %1271
    %1273 = vrot.lane.b32.xlu0 %v710, 8
    %v1274 = vpop.permute.xlu0 %1273
    %1275 = vrot.lane.b32.xlu0 %v711, 8
    %v1276 = vpop.permute.xlu0 %1275
    %v1277 = vsel %vm457, %v1266, %v1268
    %v1278 = vsel %vm457, %v1268, %v1270
    %v1279 = vsel %vm457, %v1272, %v1274
    %v1280 = vsel %vm457, %v1274, %v1276
    %1285 = vst [vmem:[#allocation5 + $0x2c0] sm:$0xff] %v1277
    %1286 = vst [vmem:[#allocation5 + $0x2c8] sm:$0xff] %v1278
    %1287 = vst [vmem:[#allocation5 + $0x2d0] sm:$0xff] %v1279
    %1288 = vst [vmem:[#allocation5 + $0x2d8] sm:$0xff] %v1280
    %1289 = vrot.lane.b32.xlu0 %v706, 7
    %v1290 = vpop.permute.xlu0 %1289
    %1291 = vrot.lane.b32.xlu0 %v707, 7
    %v1292 = vpop.permute.xlu0 %1291
    %1293 = vrot.lane.b32.xlu0 %v708, 7
    %v1294 = vpop.permute.xlu0 %1293
    %1295 = vrot.lane.b32.xlu0 %v709, 7
    %v1296 = vpop.permute.xlu0 %1295
    %1297 = vrot.lane.b32.xlu0 %v710, 7
    %v1298 = vpop.permute.xlu0 %1297
    %1299 = vrot.lane.b32.xlu0 %v711, 7
    %v1300 = vpop.permute.xlu0 %1299
    %v1301 = vsel %vm477, %v1290, %v1292
    %v1302 = vsel %vm477, %v1292, %v1294
    %v1303 = vsel %vm477, %v1296, %v1298
    %v1304 = vsel %vm477, %v1298, %v1300
    %1309 = vst [vmem:[#allocation5 + $0x2e0] sm:$0xff] %v1301
    %1310 = vst [vmem:[#allocation5 + $0x2e8] sm:$0xff] %v1302
    %1311 = vst [vmem:[#allocation5 + $0x2f0] sm:$0xff] %v1303
    %1312 = vst [vmem:[#allocation5 + $0x2f8] sm:$0xff] %v1304
    %1313 = vrot.lane.b32.xlu0 %v706, 6
    %v1314 = vpop.permute.xlu0 %1313
    %1315 = vrot.lane.b32.xlu0 %v707, 6
    %v1316 = vpop.permute.xlu0 %1315
    %1317 = vrot.lane.b32.xlu0 %v708, 6
    %v1318 = vpop.permute.xlu0 %1317
    %1319 = vrot.lane.b32.xlu0 %v709, 6
    %v1320 = vpop.permute.xlu0 %1319
    %1321 = vrot.lane.b32.xlu0 %v710, 6
    %v1322 = vpop.permute.xlu0 %1321
    %1323 = vrot.lane.b32.xlu0 %v711, 6
    %v1324 = vpop.permute.xlu0 %1323
    %v1325 = vsel %vm496, %v1314, %v1316
    %v1326 = vsel %vm496, %v1316, %v1318
    %v1327 = vsel %vm496, %v1320, %v1322
    %v1328 = vsel %vm496, %v1322, %v1324
    %1333 = vst [vmem:[#allocation5 + $0x300] sm:$0xff] %v1325
    %1334 = vst [vmem:[#allocation5 + $0x308] sm:$0xff] %v1326
    %1335 = vst [vmem:[#allocation5 + $0x310] sm:$0xff] %v1327
    %1336 = vst [vmem:[#allocation5 + $0x318] sm:$0xff] %v1328
    %1337 = vrot.lane.b32.xlu0 %v706, 5
    %v1338 = vpop.permute.xlu0 %1337
    %1339 = vrot.lane.b32.xlu0 %v707, 5
    %v1340 = vpop.permute.xlu0 %1339
    %1341 = vrot.lane.b32.xlu0 %v708, 5
    %v1342 = vpop.permute.xlu0 %1341
    %1343 = vrot.lane.b32.xlu0 %v709, 5
    %v1344 = vpop.permute.xlu0 %1343
    %1345 = vrot.lane.b32.xlu0 %v710, 5
    %v1346 = vpop.permute.xlu0 %1345
    %1347 = vrot.lane.b32.xlu0 %v711, 5
    %v1348 = vpop.permute.xlu0 %1347
    %v1349 = vsel %vm516, %v1338, %v1340
    %v1350 = vsel %vm516, %v1340, %v1342
    %v1351 = vsel %vm516, %v1344, %v1346
    %v1352 = vsel %vm516, %v1346, %v1348
    %1357 = vst [vmem:[#allocation5 + $0x320] sm:$0xff] %v1349
    %1358 = vst [vmem:[#allocation5 + $0x328] sm:$0xff] %v1350
    %1359 = vst [vmem:[#allocation5 + $0x330] sm:$0xff] %v1351
    %1360 = vst [vmem:[#allocation5 + $0x338] sm:$0xff] %v1352
    %1361 = vrot.lane.b32.xlu0 %v706, 4
    %v1362 = vpop.permute.xlu0 %1361
    %1363 = vrot.lane.b32.xlu0 %v707, 4
    %v1364 = vpop.permute.xlu0 %1363
    %1365 = vrot.lane.b32.xlu0 %v708, 4
    %v1366 = vpop.permute.xlu0 %1365
    %1367 = vrot.lane.b32.xlu0 %v709, 4
    %v1368 = vpop.permute.xlu0 %1367
    %1369 = vrot.lane.b32.xlu0 %v710, 4
    %v1370 = vpop.permute.xlu0 %1369
    %1371 = vrot.lane.b32.xlu0 %v711, 4
    %v1372 = vpop.permute.xlu0 %1371
    %v1373 = vsel %vm535, %v1362, %v1364
    %v1374 = vsel %vm535, %v1364, %v1366
    %v1375 = vsel %vm535, %v1368, %v1370
    %v1376 = vsel %vm535, %v1370, %v1372
    %1381 = vst [vmem:[#allocation5 + $0x340] sm:$0xff] %v1373
    %1382 = vst [vmem:[#allocation5 + $0x348] sm:$0xff] %v1374
    %1383 = vst [vmem:[#allocation5 + $0x350] sm:$0xff] %v1375
    %1384 = vst [vmem:[#allocation5 + $0x358] sm:$0xff] %v1376
    %1385 = vrot.lane.b32.xlu0 %v706, 3
    %v1386 = vpop.permute.xlu0 %1385
    %1387 = vrot.lane.b32.xlu0 %v707, 3
    %v1388 = vpop.permute.xlu0 %1387
    %1389 = vrot.lane.b32.xlu0 %v708, 3
    %v1390 = vpop.permute.xlu0 %1389
    %1391 = vrot.lane.b32.xlu0 %v709, 3
    %v1392 = vpop.permute.xlu0 %1391
    %1393 = vrot.lane.b32.xlu0 %v710, 3
    %v1394 = vpop.permute.xlu0 %1393
    %1395 = vrot.lane.b32.xlu0 %v711, 3
    %v1396 = vpop.permute.xlu0 %1395
    %v1397 = vsel %vm555, %v1386, %v1388
    %v1398 = vsel %vm555, %v1388, %v1390
    %v1399 = vsel %vm555, %v1392, %v1394
    %v1400 = vsel %vm555, %v1394, %v1396
    %1405 = vst [vmem:[#allocation5 + $0x360] sm:$0xff] %v1397
    %1406 = vst [vmem:[#allocation5 + $0x368] sm:$0xff] %v1398
    %1407 = vst [vmem:[#allocation5 + $0x370] sm:$0xff] %v1399
    %1408 = vst [vmem:[#allocation5 + $0x378] sm:$0xff] %v1400
    %1409 = vrot.lane.b32.xlu0 %v706, 2
    %v1410 = vpop.permute.xlu0 %1409
    %1411 = vrot.lane.b32.xlu0 %v707, 2
    %v1412 = vpop.permute.xlu0 %1411
    %1413 = vrot.lane.b32.xlu0 %v708, 2
    %v1414 = vpop.permute.xlu0 %1413
    %1415 = vrot.lane.b32.xlu0 %v709, 2
    %v1416 = vpop.permute.xlu0 %1415
    %1417 = vrot.lane.b32.xlu0 %v710, 2
    %v1418 = vpop.permute.xlu0 %1417
    %1419 = vrot.lane.b32.xlu0 %v711, 2
    %v1420 = vpop.permute.xlu0 %1419
    %v1421 = vsel %vm574, %v1410, %v1412
    %v1422 = vsel %vm574, %v1412, %v1414
    %v1423 = vsel %vm574, %v1416, %v1418
    %v1424 = vsel %vm574, %v1418, %v1420
    %1429 = vst [vmem:[#allocation5 + $0x380] sm:$0xff] %v1421
    %1430 = vst [vmem:[#allocation5 + $0x388] sm:$0xff] %v1422
    %1431 = vst [vmem:[#allocation5 + $0x390] sm:$0xff] %v1423
    %1432 = vst [vmem:[#allocation5 + $0x398] sm:$0xff] %v1424
    %1433 = vrot.lane.b32.xlu0 %v706, 1
    %v1434 = vpop.permute.xlu0 %1433
    %1435 = vrot.lane.b32.xlu0 %v707, 1
    %v1436 = vpop.permute.xlu0 %1435
    %1437 = vrot.lane.b32.xlu0 %v708, 1
    %v1438 = vpop.permute.xlu0 %1437
    %1439 = vrot.lane.b32.xlu0 %v709, 1
    %v1440 = vpop.permute.xlu0 %1439
    %1441 = vrot.lane.b32.xlu0 %v710, 1
    %v1442 = vpop.permute.xlu0 %1441
    %1443 = vrot.lane.b32.xlu0 %v711, 1
    %v1444 = vpop.permute.xlu0 %1443
    %v1445 = vsel %vm594, %v1434, %v1436
    %v1446 = vsel %vm594, %v1436, %v1438
    %v1447 = vsel %vm594, %v1440, %v1442
    %v1448 = vsel %vm594, %v1442, %v1444
    %1453 = vst [vmem:[#allocation5 + $0x3a0] sm:$0xff] %v1445
    %1454 = vst [vmem:[#allocation5 + $0x3a8] sm:$0xff] %v1446
    %1455 = vst [vmem:[#allocation5 + $0x3b0] sm:$0xff] %v1447
    %1456 = vst [vmem:[#allocation5 + $0x3b8] sm:$0xff] %v1448
    %1457 = vst [vmem:[#allocation5 + $0x3c0] sm:$0xff] %v707
    %1458 = vst [vmem:[#allocation5 + $0x3c8] sm:$0xff] %v708
    %1459 = vst [vmem:[#allocation5 + $0x3d0] sm:$0xff] %v710
    %1460 = vst [vmem:[#allocation5 + $0x3d8] sm:$0xff] %v711
    %v1461 = vld [vmem:[#allocation15] sm:$0xff]
    %v1462 = vld [vmem:[#allocation15 + $0x8] sm:$0xff]
    %v1463 = vld [vmem:[#allocation5] sm:$0xff]
    %v1464 = vld [vmem:[#allocation5 + $0x8] sm:$0xff]
    %v1465 = vld [vmem:[#allocation5 + $0x10] sm:$0xff]
    %v1466 = vld [vmem:[#allocation5 + $0x18] sm:$0xff]
    %v1467 = vld [vmem:[#allocation5 + $0x20] sm:$0xff]
    %v1468 = vld [vmem:[#allocation5 + $0x28] sm:$0xff]
    %v1469 = vld [vmem:[#allocation5 + $0x30] sm:$0xff]
    %v1470 = vld [vmem:[#allocation5 + $0x38] sm:$0xff]
    %v1471 = vld [vmem:[#allocation5 + $0x40] sm:$0xff]
    %v1472 = vld [vmem:[#allocation5 + $0x48] sm:$0xff]
    %v1473 = vld [vmem:[#allocation5 + $0x50] sm:$0xff]
    %v1474 = vld [vmem:[#allocation5 + $0x58] sm:$0xff]
    %v1475 = vld [vmem:[#allocation5 + $0x60] sm:$0xff]
    %v1476 = vld [vmem:[#allocation5 + $0x68] sm:$0xff]
    %v1477 = vld [vmem:[#allocation5 + $0x70] sm:$0xff]
    %v1478 = vld [vmem:[#allocation5 + $0x78] sm:$0xff]
    %v1479 = vld [vmem:[#allocation5 + $0x80] sm:$0xff]
    %v1480 = vld [vmem:[#allocation5 + $0x88] sm:$0xff]
    %v1481 = vld [vmem:[#allocation5 + $0x90] sm:$0xff]
    %v1482 = vld [vmem:[#allocation5 + $0x98] sm:$0xff]
    %v1483 = vld [vmem:[#allocation5 + $0xa0] sm:$0xff]
    %v1484 = vld [vmem:[#allocation5 + $0xa8] sm:$0xff]
    %v1485 = vld [vmem:[#allocation5 + $0xb0] sm:$0xff]
    %v1486 = vld [vmem:[#allocation5 + $0xb8] sm:$0xff]
    %v1487 = vld [vmem:[#allocation5 + $0xc0] sm:$0xff]
    %v1488 = vld [vmem:[#allocation5 + $0xc8] sm:$0xff]
    %v1489 = vld [vmem:[#allocation5 + $0xd0] sm:$0xff]
    %v1490 = vld [vmem:[#allocation5 + $0xd8] sm:$0xff]
    %v1491 = vld [vmem:[#allocation5 + $0xe0] sm:$0xff]
    %v1492 = vld [vmem:[#allocation5 + $0xe8] sm:$0xff]
    %v1493 = vld [vmem:[#allocation5 + $0xf0] sm:$0xff]
    %v1494 = vld [vmem:[#allocation5 + $0xf8] sm:$0xff]
    %v1495 = vld [vmem:[#allocation5 + $0x100] sm:$0xff]
    %v1496 = vld [vmem:[#allocation5 + $0x108] sm:$0xff]
    %v1497 = vld [vmem:[#allocation5 + $0x110] sm:$0xff]
    %v1498 = vld [vmem:[#allocation5 + $0x118] sm:$0xff]
    %v1499 = vld [vmem:[#allocation5 + $0x120] sm:$0xff]
    %v1500 = vld [vmem:[#allocation5 + $0x128] sm:$0xff]
    %v1501 = vld [vmem:[#allocation5 + $0x130] sm:$0xff]
    %v1502 = vld [vmem:[#allocation5 + $0x138] sm:$0xff]
    %v1503 = vld [vmem:[#allocation5 + $0x140] sm:$0xff]
    %v1504 = vld [vmem:[#allocation5 + $0x148] sm:$0xff]
    %v1505 = vld [vmem:[#allocation5 + $0x150] sm:$0xff]
    %v1506 = vld [vmem:[#allocation5 + $0x158] sm:$0xff]
    %v1507 = vld [vmem:[#allocation5 + $0x160] sm:$0xff]
    %v1508 = vld [vmem:[#allocation5 + $0x168] sm:$0xff]
    %v1509 = vld [vmem:[#allocation5 + $0x170] sm:$0xff]
    %v1510 = vld [vmem:[#allocation5 + $0x178] sm:$0xff]
    %v1511 = vld [vmem:[#allocation5 + $0x180] sm:$0xff]
    %v1512 = vld [vmem:[#allocation5 + $0x188] sm:$0xff]
    %v1513 = vld [vmem:[#allocation5 + $0x190] sm:$0xff]
    %v1514 = vld [vmem:[#allocation5 + $0x198] sm:$0xff]
    %v1515 = vld [vmem:[#allocation5 + $0x1a0] sm:$0xff]
    %v1516 = vld [vmem:[#allocation5 + $0x1a8] sm:$0xff]
    %v1517 = vld [vmem:[#allocation5 + $0x1b0] sm:$0xff]
    %v1518 = vld [vmem:[#allocation5 + $0x1b8] sm:$0xff]
    %v1519 = vld [vmem:[#allocation5 + $0x1c0] sm:$0xff]
    %v1520 = vld [vmem:[#allocation5 + $0x1c8] sm:$0xff]
    %v1521 = vld [vmem:[#allocation5 + $0x1d0] sm:$0xff]
    %v1522 = vld [vmem:[#allocation5 + $0x1d8] sm:$0xff]
    %v1523 = vld [vmem:[#allocation5 + $0x1e0] sm:$0xff]
    %v1524 = vld [vmem:[#allocation5 + $0x1e8] sm:$0xff]
    %v1525 = vld [vmem:[#allocation5 + $0x1f0] sm:$0xff]
    %v1526 = vld [vmem:[#allocation5 + $0x1f8] sm:$0xff]
    %v1527 = vld [vmem:[#allocation5 + $0x200] sm:$0xff]
    %v1528 = vld [vmem:[#allocation5 + $0x208] sm:$0xff]
    %v1529 = vld [vmem:[#allocation5 + $0x210] sm:$0xff]
    %v1530 = vld [vmem:[#allocation5 + $0x218] sm:$0xff]
    %v1531 = vld [vmem:[#allocation5 + $0x220] sm:$0xff]
    %v1532 = vld [vmem:[#allocation5 + $0x228] sm:$0xff]
    %v1533 = vld [vmem:[#allocation5 + $0x230] sm:$0xff]
    %v1534 = vld [vmem:[#allocation5 + $0x238] sm:$0xff]
    %v1535 = vld [vmem:[#allocation5 + $0x240] sm:$0xff]
    %v1536 = vld [vmem:[#allocation5 + $0x248] sm:$0xff]
    %v1537 = vld [vmem:[#allocation5 + $0x250] sm:$0xff]
    %v1538 = vld [vmem:[#allocation5 + $0x258] sm:$0xff]
    %v1539 = vld [vmem:[#allocation5 + $0x260] sm:$0xff]
    %v1540 = vld [vmem:[#allocation5 + $0x268] sm:$0xff]
    %v1541 = vld [vmem:[#allocation5 + $0x270] sm:$0xff]
    %v1542 = vld [vmem:[#allocation5 + $0x278] sm:$0xff]
    %v1543 = vld [vmem:[#allocation5 + $0x280] sm:$0xff]
    %v1544 = vld [vmem:[#allocation5 + $0x288] sm:$0xff]
    %v1545 = vld [vmem:[#allocation5 + $0x290] sm:$0xff]
    %v1546 = vld [vmem:[#allocation5 + $0x298] sm:$0xff]
    %v1547 = vld [vmem:[#allocation5 + $0x2a0] sm:$0xff]
    %v1548 = vld [vmem:[#allocation5 + $0x2a8] sm:$0xff]
    %v1549 = vld [vmem:[#allocation5 + $0x2b0] sm:$0xff]
    %v1550 = vld [vmem:[#allocation5 + $0x2b8] sm:$0xff]
    %v1551 = vld [vmem:[#allocation5 + $0x2c0] sm:$0xff]
    %v1552 = vld [vmem:[#allocation5 + $0x2c8] sm:$0xff]
    %v1553 = vld [vmem:[#allocation5 + $0x2d0] sm:$0xff]
    %v1554 = vld [vmem:[#allocation5 + $0x2d8] sm:$0xff]
    %v1555 = vld [vmem:[#allocation5 + $0x2e0] sm:$0xff]
    %v1556 = vld [vmem:[#allocation5 + $0x2e8] sm:$0xff]
    %v1557 = vld [vmem:[#allocation5 + $0x2f0] sm:$0xff]
    %v1558 = vld [vmem:[#allocation5 + $0x2f8] sm:$0xff]
    %v1559 = vld [vmem:[#allocation5 + $0x300] sm:$0xff]
    %v1560 = vld [vmem:[#allocation5 + $0x308] sm:$0xff]
    %v1561 = vld [vmem:[#allocation5 + $0x310] sm:$0xff]
    %v1562 = vld [vmem:[#allocation5 + $0x318] sm:$0xff]
    %v1563 = vld [vmem:[#allocation5 + $0x320] sm:$0xff]
    %v1564 = vld [vmem:[#allocation5 + $0x328] sm:$0xff]
    %v1565 = vld [vmem:[#allocation5 + $0x330] sm:$0xff]
    %v1566 = vld [vmem:[#allocation5 + $0x338] sm:$0xff]
    %v1567 = vld [vmem:[#allocation5 + $0x340] sm:$0xff]
    %v1568 = vld [vmem:[#allocation5 + $0x348] sm:$0xff]
    %v1569 = vld [vmem:[#allocation5 + $0x350] sm:$0xff]
    %v1570 = vld [vmem:[#allocation5 + $0x358] sm:$0xff]
    %v1571 = vld [vmem:[#allocation5 + $0x360] sm:$0xff]
    %v1572 = vld [vmem:[#allocation5 + $0x368] sm:$0xff]
    %v1573 = vld [vmem:[#allocation5 + $0x370] sm:$0xff]
    %v1574 = vld [vmem:[#allocation5 + $0x378] sm:$0xff]
    %v1575 = vld [vmem:[#allocation5 + $0x380] sm:$0xff]
    %v1576 = vld [vmem:[#allocation5 + $0x388] sm:$0xff]
    %v1577 = vld [vmem:[#allocation5 + $0x390] sm:$0xff]
    %v1578 = vld [vmem:[#allocation5 + $0x398] sm:$0xff]
    %v1579 = vld [vmem:[#allocation5 + $0x3a0] sm:$0xff]
    %v1580 = vld [vmem:[#allocation5 + $0x3a8] sm:$0xff]
    %v1581 = vld [vmem:[#allocation5 + $0x3b0] sm:$0xff]
    %v1582 = vld [vmem:[#allocation5 + $0x3b8] sm:$0xff]
    %v1583 = vld [vmem:[#allocation5 + $0x3c0] sm:$0xff]
    %v1584 = vld [vmem:[#allocation5 + $0x3c8] sm:$0xff]
    %v1585 = vld [vmem:[#allocation5 + $0x3d0] sm:$0xff]
    %v1586 = vld [vmem:[#allocation5 + $0x3d8] sm:$0xff]
    %v1587 = vld [vmem:[#allocation17] sm:$0xff]
    %1590 = vst [vmem:[#allocation1] ss:$2 sm:$0xff] %v1461
    %s1591 = scalar_lea.vmem [#allocation1], 16
    %1592 = vst [vmem:[%s1591] ss:$2 sm:$0xff] %v1462
    %v1593 = vld.sshfl [vmem:[#allocation1] sm:$0xff pattern:$0x75316420]
    %v1594 = vld.sshfl [vmem:[#allocation1 + $0x8] sm:$0xff pattern:$0x75316420]
    %v1595 = vld.sshfl [vmem:[#allocation1 + $0x10] sm:$0xff pattern:$0x75316420]
    %v1596 = vld.sshfl [vmem:[#allocation1 + $0x18] sm:$0xff pattern:$0x75316420]
    %1601 = vst [vmem:[#allocation1] ss:$2 sm:$0xff] %v1587
    %v1602 = vld.sshfl [vmem:[#allocation1] sm:$0xff pattern:$0x75316420]
    %v1603 = vld.sshfl [vmem:[#allocation1 + $0x8] sm:$0xff pattern:$0x75316420]
    %vm1606 = vcmask 916480
    %v1607 = vsel %vm1606, %v1596, 0
    %1609 = vmatpush.msra.mxu0 %v1493
    %1610 = vmatpush.msra.mxu0 %v1491
    %1611 = vmatpush.msra.mxu0 %v1489
    %1612 = vmatpush.msra.mxu0 %v1487
    %1613 = vmatpush.msra.mxu0 %v1485
    %1614 = vmatpush.msra.mxu0 %v1483
    %1615 = vmatpush.msra.mxu0 %v1481
    %1616 = vmatpush.msra.mxu0 %v1479
    %1617 = vmatpush.msra.mxu0 %v1477
    %1618 = vmatpush.msra.mxu0 %v1475
    %1619 = vmatpush.msra.mxu0 %v1473
    %1620 = vmatpush.msra.mxu0 %v1471
    %1621 = vmatpush.msra.mxu0 %v1469
    %1622 = vmatpush.msra.mxu0 %v1467
    %1623 = vmatpush.msra.mxu0 %v1465
    %1624 = vmatpush.msra.mxu0 %v1463
    %1625 = vmatmul.f32.gmra.mxu0 %v1593
    %v1626 = vpop.f32.mrf.mxu0
    %v1627 = vadd.f32 %v1602, %v1626
    %1628 = vdwg.mxu0
    %1629 = vmatpush.msra.mxu0 %v1525
    %1630 = vmatpush.msra.mxu0 %v1523
    %1631 = vmatpush.msra.mxu0 %v1521
    %1632 = vmatpush.msra.mxu0 %v1519
    %1633 = vmatpush.msra.mxu0 %v1517
    %1634 = vmatpush.msra.mxu0 %v1515
    %1635 = vmatpush.msra.mxu0 %v1513
    %1636 = vmatpush.msra.mxu0 %v1511
    %1637 = vmatpush.msra.mxu0 %v1509
    %1638 = vmatpush.msra.mxu0 %v1507
    %1639 = vmatpush.msra.mxu0 %v1505
    %1640 = vmatpush.msra.mxu0 %v1503
    %1641 = vmatpush.msra.mxu0 %v1501
    %1642 = vmatpush.msra.mxu0 %v1499
    %1643 = vmatpush.msra.mxu0 %v1497
    %1644 = vmatpush.msra.mxu0 %v1495
    %1645 = vmatmul.f32.gmra.mxu0 %v1594
    %v1646 = vpop.f32.mrf.mxu0
    %v1647 = vadd.f32 %v1627, %v1646
    %1648 = vdwg.mxu0
    %1649 = vmatpush.msra.mxu0 %v1557
    %1650 = vmatpush.msra.mxu0 %v1555
    %1651 = vmatpush.msra.mxu0 %v1553
    %1652 = vmatpush.msra.mxu0 %v1551
    %1653 = vmatpush.msra.mxu0 %v1549
    %1654 = vmatpush.msra.mxu0 %v1547
    %1655 = vmatpush.msra.mxu0 %v1545
    %1656 = vmatpush.msra.mxu0 %v1543
    %1657 = vmatpush.msra.mxu0 %v1541
    %1658 = vmatpush.msra.mxu0 %v1539
    %1659 = vmatpush.msra.mxu0 %v1537
    %1660 = vmatpush.msra.mxu0 %v1535
    %1661 = vmatpush.msra.mxu0 %v1533
    %1662 = vmatpush.msra.mxu0 %v1531
    %1663 = vmatpush.msra.mxu0 %v1529
    %1664 = vmatpush.msra.mxu0 %v1527
    %1665 = vmatmul.f32.gmra.mxu0 %v1595
    %v1666 = vpop.f32.mrf.mxu0
    %v1667 = vadd.f32 %v1647, %v1666
    %1668 = vdwg.mxu0
    %1669 = vmatpush.msra.mxu0 0.0
    %1670 = vmatpush.msra.mxu0 0.0
    %1671 = vmatpush.msra.mxu0 %v1585
    %1672 = vmatpush.msra.mxu0 %v1583
    %1673 = vmatpush.msra.mxu0 %v1581
    %1674 = vmatpush.msra.mxu0 %v1579
    %1675 = vmatpush.msra.mxu0 %v1577
    %1676 = vmatpush.msra.mxu0 %v1575
    %1677 = vmatpush.msra.mxu0 %v1573
    %1678 = vmatpush.msra.mxu0 %v1571
    %1679 = vmatpush.msra.mxu0 %v1569
    %1680 = vmatpush.msra.mxu0 %v1567
    %1681 = vmatpush.msra.mxu0 %v1565
    %1682 = vmatpush.msra.mxu0 %v1563
    %1683 = vmatpush.msra.mxu0 %v1561
    %1684 = vmatpush.msra.mxu0 %v1559
    %1685 = vmatmul.f32.gmra.mxu0 %v1607
    %v1686 = vpop.f32.mrf.mxu0
    %v1687 = vadd.f32 %v1667, %v1686
    %1688 = vdwg.mxu0
    %1689 = vmatpush.msra.mxu0 %v1494
    %1690 = vmatpush.msra.mxu0 %v1492
    %1691 = vmatpush.msra.mxu0 %v1490
    %1692 = vmatpush.msra.mxu0 %v1488
    %1693 = vmatpush.msra.mxu0 %v1486
    %1694 = vmatpush.msra.mxu0 %v1484
    %1695 = vmatpush.msra.mxu0 %v1482
    %1696 = vmatpush.msra.mxu0 %v1480
    %1697 = vmatpush.msra.mxu0 %v1478
    %1698 = vmatpush.msra.mxu0 %v1476
    %1699 = vmatpush.msra.mxu0 %v1474
    %1700 = vmatpush.msra.mxu0 %v1472
    %1701 = vmatpush.msra.mxu0 %v1470
    %1702 = vmatpush.msra.mxu0 %v1468
    %1703 = vmatpush.msra.mxu0 %v1466
    %1704 = vmatpush.msra.mxu0 %v1464
    %1705 = vmatmul.f32.gmra.mxu0 %v1593
    %v1706 = vpop.f32.mrf.mxu0
    %v1707 = vadd.f32 %v1603, %v1706
    %1708 = vdwg.mxu0
    %1709 = vmatpush.msra.mxu0 %v1526
    %1710 = vmatpush.msra.mxu0 %v1524
    %1711 = vmatpush.msra.mxu0 %v1522
    %1712 = vmatpush.msra.mxu0 %v1520
    %1713 = vmatpush.msra.mxu0 %v1518
    %1714 = vmatpush.msra.mxu0 %v1516
    %1715 = vmatpush.msra.mxu0 %v1514
    %1716 = vmatpush.msra.mxu0 %v1512
    %1717 = vmatpush.msra.mxu0 %v1510
    %1718 = vmatpush.msra.mxu0 %v1508
    %1719 = vmatpush.msra.mxu0 %v1506
    %1720 = vmatpush.msra.mxu0 %v1504
    %1721 = vmatpush.msra.mxu0 %v1502
    %1722 = vmatpush.msra.mxu0 %v1500
    %1723 = vmatpush.msra.mxu0 %v1498
    %1724 = vmatpush.msra.mxu0 %v1496
    %1725 = vmatmul.f32.gmra.mxu0 %v1594
    %v1726 = vpop.f32.mrf.mxu0
    %v1727 = vadd.f32 %v1707, %v1726
    %1728 = vdwg.mxu0
    %1729 = vmatpush.msra.mxu0 %v1558
    %1730 = vmatpush.msra.mxu0 %v1556
    %1731 = vmatpush.msra.mxu0 %v1554
    %1732 = vmatpush.msra.mxu0 %v1552
    %1733 = vmatpush.msra.mxu0 %v1550
    %1734 = vmatpush.msra.mxu0 %v1548
    %1735 = vmatpush.msra.mxu0 %v1546
    %1736 = vmatpush.msra.mxu0 %v1544
    %1737 = vmatpush.msra.mxu0 %v1542
    %1738 = vmatpush.msra.mxu0 %v1540
    %1739 = vmatpush.msra.mxu0 %v1538
    %1740 = vmatpush.msra.mxu0 %v1536
    %1741 = vmatpush.msra.mxu0 %v1534
    %1742 = vmatpush.msra.mxu0 %v1532
    %1743 = vmatpush.msra.mxu0 %v1530
    %1744 = vmatpush.msra.mxu0 %v1528
    %1745 = vmatmul.f32.gmra.mxu0 %v1595
    %v1746 = vpop.f32.mrf.mxu0
    %v1747 = vadd.f32 %v1727, %v1746
    %1748 = vdwg.mxu0
    %1749 = vmatpush.msra.mxu0 0.0
    %1750 = vmatpush.msra.mxu0 0.0
    %1751 = vmatpush.msra.mxu0 %v1586
    %1752 = vmatpush.msra.mxu0 %v1584
    %1753 = vmatpush.msra.mxu0 %v1582
    %1754 = vmatpush.msra.mxu0 %v1580
    %1755 = vmatpush.msra.mxu0 %v1578
    %1756 = vmatpush.msra.mxu0 %v1576
    %1757 = vmatpush.msra.mxu0 %v1574
    %1758 = vmatpush.msra.mxu0 %v1572
    %1759 = vmatpush.msra.mxu0 %v1570
    %1760 = vmatpush.msra.mxu0 %v1568
    %1761 = vmatpush.msra.mxu0 %v1566
    %1762 = vmatpush.msra.mxu0 %v1564
    %1763 = vmatpush.msra.mxu0 %v1562
    %1764 = vmatpush.msra.mxu0 %v1560
    %1765 = vmatmul.f32.gmra.mxu0 %v1607
    %v1766 = vpop.f32.mrf.mxu0
    %v1767 = vadd.f32 %v1747, %v1766
    %1768 = vdwg.mxu0
    %v1771 = vrot.slane %v1767, 4
    %v1772 = vsel %vm175, %v1687, %v1771
    %vm1774 = vcmask 588804
    %vm1775 = vmor %vm1774, %vm175
    %1776 = vst.msk [vmem:[#allocation18] sm:$0xff] %vm1775, %v1772
    // Predicated region
    $region58: #{tpu_custom_call.1} parent=1 // pred_check
      _
    $region59: #{tpu_custom_call.1} parent=1 // pred_check_branch
      %1778 = sbr.rel (0) target = $region61
    $region60: #{tpu_custom_call.1} parent=1 // pred_region
      %1780 = vsyncadd [#allocation8], 0
      %s1782 = sshll.u32 [#allocation18], 4
      %s1783 = int_to_ptr.vmem [resolvable:$true] %s1782
      %s1784 = sshll.u32 %s7, 4
      %s1785 = int_to_ptr.hbm [resolvable:$true] %s1784
      %1787 = dma.vmem_to_hbm [thread:$0]  %s1783, 128, %s1785, [#allocation8]
    $region61: #{tpu_custom_call.1} parent=1 // pred_fallthru
      _
    // Predicated region
    $region62: #{tpu_custom_call.1} parent=1 // pred_check
      _
    $region63: #{tpu_custom_call.1} parent=1 // pred_check_branch
      %1789 = sbr.rel (0) target = $region65
    $region64: #{tpu_custom_call.1} parent=1 // pred_region
      %1791 = dma.done [#allocation8], 128
    $region65: #{tpu_custom_call.1} parent=1 // pred_fallthru
      _
    %1792 = vsyncpa [#allocation7], 1
    %1793 = vsyncpa [#allocation10], 1
    %1794 = vsyncpa [#allocation13], 1
    %1795 = vsyncpa [#allocation16], 1
    %1796 = vsyncpa [#allocation8], 1

</llo_original>
